<compile_context>
chip_gen: v5e
topology: v5e:2x2
jax: 0.10.0
libtpu: 0.0.40
codegen_flags: <defaults>
</compile_context>

<pallas_src>
import jax
import jax.numpy as jnp
from jax.experimental import pallas as pl
from jax.experimental.pallas import tpu as pltpu

LEAKY_SLOPE = 0.01   # nn.LeakyReLU default
IN_EPS = 1e-5        # nn.InstanceNorm2d default eps


def _round_up(x, m):
    return -(-x // m) * m


# ----------------------------- Pallas kernel ------------------------------ #
def _make_layer_kernel(fuse_norm_act):
    """One grid step == one sample n.

    p_ref : (1, G, K, P)    bf16 im2col patches of sample n (G parity groups)
    w_ref : (G, Cout, K)    bf16 weight matrices (shared across the grid)
    o_ref : (1, G, Cout, P) output (bf16 for fused layers, f32 for the last)
    """
    def kernel(p_ref, w_ref, o_ref):
        G = p_ref.shape[1]
        P = p_ref.shape[3]
        # G small static matmuls on the MXU, f32 accumulation.
        ys = [jnp.dot(w_ref[g], p_ref[0, g],
                      preferred_element_type=jnp.float32)     # (Cout, P) f32
              for g in range(G)]
        if fuse_norm_act:
            # InstanceNorm2d(affine=False): per (n, c) stats over the full
            # spatial extent G*P, computed two-pass from per-group partials.
            inv_n = 1.0 / (G * P)
            s1 = ys[0].sum(axis=-1, keepdims=True)
            for g in range(1, G):
                s1 = s1 + ys[g].sum(axis=-1, keepdims=True)
            mean = s1 * inv_n                                  # (Cout, 1)
            cs = [y - mean for y in ys]
            s2 = (cs[0] * cs[0]).sum(axis=-1, keepdims=True)
            for g in range(1, G):
                s2 = s2 + (cs[g] * cs[g]).sum(axis=-1, keepdims=True)
            scale = jax.lax.rsqrt(s2 * inv_n + IN_EPS)         # EUP rsqrt
            for g in range(G):
                yg = cs[g] * scale
                # LeakyReLU(0.01) == max(y, 0.01*y) for 0 < slope < 1.
                o_ref[0, g] = jnp.maximum(yg, LEAKY_SLOPE * yg).astype(o_ref.dtype)
        else:
            for g in range(G):
                o_ref[0, g] = ys[g].astype(o_ref.dtype)
    return kernel


def _pallas_layer(patches, w_mats, fuse_norm_act, out_dtype):
    """patches (N,G,K,P) bf16, w_mats (G,Cout,K) bf16 -> (N,G,Cout,P) out_dtype."""
    N, G, K, P = patches.shape
    Cout = w_mats.shape[1]
    out_isz = jnp.dtype(out_dtype).itemsize
    cost = pl.CostEstimate(
        flops=2 * N * G * Cout * K * P,
        transcendentals=(N * Cout) if fuse_norm_act else 0,
        bytes_accessed=int(patches.size * 2 + w_mats.size * 2
                           + N * G * Cout * P * out_isz),
    )
    return pl.pallas_call(
        _make_layer_kernel(fuse_norm_act),
        out_shape=jax.ShapeDtypeStruct((N, G, Cout, P), out_dtype),
        grid=(N,),
        in_specs=[
            pl.BlockSpec((1, G, K, P), lambda n: (n, 0, 0, 0)),
            pl.BlockSpec((G, Cout, K), lambda n: (0, 0, 0)),   # shared weights
        ],
        out_specs=pl.BlockSpec((1, G, Cout, P), lambda n: (n, 0, 0, 0)),
        compiler_params=pltpu.CompilerParams(
            dimension_semantics=("parallel",),       # batch shards over TCs (v7x)
            vmem_limit_bytes=32 * 1024 * 1024,
        ),
        cost_estimate=cost,
    )(patches, w_mats)


# ------------------------------- JAX glue --------------------------------- #
def _pad_cout_to_8(w_mats):
    """Pad the Cout axis (axis=1) of (G, Cout, K) up to a multiple of 8."""
    Cout = w_mats.shape[1]
    pad = _round_up(Cout, 8) - Cout
    if pad:
        w_mats = jnp.pad(w_mats, ((0, 0), (0, pad), (0, 0)))
    return w_mats


def conv_transpose_s1(x, w_t, padding, fuse_norm_act, out_dtype):
    """ConvTranspose2d(stride=1, bias=False) [+ InstanceNorm2d + LeakyReLU].

    x : (N, Cin, H, W),  w_t : (Cin, Cout, kH, kW)  (PyTorch layout)
    stride-1 transposed conv == pad by (k-1-p) + correlate with flipped kernel.
    """
    N, Cin, H, W = x.shape
    _, Cout, kH, kW = w_t.shape
    p = padding
    Ho, Wo = H + kH - 1 - 2 * p, W + kW - 1 - 2 * p

    xb = x.astype(jnp.bfloat16)
    x_pad = jnp.pad(xb, ((0, 0), (0, 0), (kH - 1 - p,) * 2, (kW - 1 - p,) * 2))
    taps = [x_pad[:, :, u:u + Ho, v:v + Wo]
            for u in range(kH) for v in range(kW)]            # each (N,Cin,Ho,Wo)
    patches = jnp.stack(taps, axis=2).reshape(N, 1, Cin * kH * kW, Ho * Wo)

    w_flip = w_t[:, :, ::-1, ::-1]                            # (Cin,Cout,kH,kW)
    w_mat = jnp.transpose(w_flip, (1, 0, 2, 3)).reshape(1, Cout, Cin * kH * kW)
    w_mat = _pad_cout_to_8(w_mat.astype(jnp.bfloat16))

    out = _pallas_layer(patches, w_mat, fuse_norm_act, out_dtype)   # (N,1,Cp,Ho*Wo)
    return out[:, 0, :Cout].reshape(N, Cout, Ho, Wo)                # NCHW


def conv_transpose_s2(x, w_t, fuse_norm_act, out_dtype):
    """ConvTranspose2d(kernel=4, stride=2, padding=1, bias=False) via the
    sub-pixel decomposition: each output-pixel parity (r, c) is a 2x2 conv
    over the 1-padded input -> no dilation zeros are ever materialized.

    x : (N, Cin, H, W) -> (N, Cout, 2H, 2W)
    """
    N, Cin, H, W = x.shape
    Cout = w_t.shape[1]

    xb = jnp.pad(x.astype(jnp.bfloat16), ((0, 0), (0, 0), (1, 1), (1, 1)))
    pgs, wgs = [], []
    for r in range(2):
        for c in range(2):
            # out[:, :, 2q+r, 2p+c] = sum_{ci,a,b} x_pad[ci, q+r+a, p+c+b]
            #                                      * w_t[ci, :, 3-r-2a, 3-c-2b]
            taps = [xb[:, :, r + a:r + a + H, c + b:c + b + W]
                    for a in range(2) for b in range(2)]
            pgs.append(jnp.stack(taps, axis=2).reshape(N, Cin * 4, H * W))
            rows = jnp.array([3 - r, 1 - r])
            cols = jnp.array([3 - c, 1 - c])
            sub = w_t[:, :, rows, :][:, :, :, cols]           # (Cin, Cout, 2, 2)
            wgs.append(jnp.transpose(sub, (1, 0, 2, 3)).reshape(Cout, Cin * 4))
    patches = jnp.stack(pgs, axis=1)                          # (N, 4, Cin*4, H*W)
    w_mats = _pad_cout_to_8(jnp.stack(wgs, axis=0).astype(jnp.bfloat16))

    out = _pallas_layer(patches, w_mats, fuse_norm_act, out_dtype)  # (N,4,Cp,H*W)
    out = out[:, :, :Cout].reshape(N, 2, 2, Cout, H, W)       # (n, r, c, co, q, p)
    out = jnp.transpose(out, (0, 3, 4, 1, 5, 2))              # (n, co, q, r, p, c)
    return out.reshape(N, Cout, 2 * H, 2 * W)


# ------------------------------ Generator --------------------------------- #
class GeneratorPallas:
    """Mirror of Generator(image_size, z_dim, h_size, upsample_op=ConvTranspose2d,
    normalization_op=InstanceNorm2d, activation_op=LeakyReLU, to_1x1=True)."""

    def __init__(self, image_size, z_dim, h_size, key):
        n_channels = image_size[0]
        img_new = (image_size[1] // 2 ** len(h_size),
                   image_size[2] // 2 ** len(h_size))
        assert min(img_new) >= 2, "h_size too long, image dimension perished"
        self.kernel_start = img_new                           # to_1x1=True
        keys = jax.random.split(key, len(h_size) + 1)
        self.weights = []
        # start: ConvTranspose2d(z_dim, h_size[0], kernel=img_new, stride=1, pad=0)
        self.weights.append(0.1 * jax.random.normal(
            keys[0], (z_dim, h_size[0], img_new[0], img_new[1]), jnp.float32))
        c_bot = h_size[0]
        # middle: ConvTranspose2d(c_bot, c_top, 4, stride=2, padding=1)
        for i, c_top in enumerate(h_size[1:]):
            self.weights.append(0.1 * jax.random.normal(
                keys[1 + i], (c_bot, c_top, 4, 4), jnp.float32))
            c_bot = c_top
        # end: ConvTranspose2d(c_bot, n_channels, 4, stride=2, padding=1), no norm/act
        self.weights.append(0.1 * jax.random.normal(
            keys[-1], (c_bot, n_channels, 4, 4), jnp.float32))

    def __call__(self, z):
        x = conv_transpose_s1(z, self.weights[0], padding=0,
                              fuse_norm_act=True, out_dtype=jnp.bfloat16)
        for w in self.weights[1:-1]:
            x = conv_transpose_s2(x, w, fuse_norm_act=True,
                                  out_dtype=jnp.bfloat16)
        return conv_transpose_s2(x, self.weights[-1], fuse_norm_act=False,
                                 out_dtype=jnp.float32)


# -------------------------- pure-JAX reference ---------------------------- #
def _ref_convT(x, w_t, s, p):
    """bf16-operand / f32-accumulate transposed conv (same precision as kernel)."""
    Cin, Cout, kH, kW = w_t.shape
    w = jnp.transpose(w_t[:, :, ::-1, ::-1], (1, 0, 2, 3))    # OIHW
    return jax.lax.conv_general_dilated(
        x.astype(jnp.bfloat16), w.astype(jnp.bfloat16),
        window_strides=(1, 1),
        padding=[(kH - 1 - p, kH - 1 - p), (kW - 1 - p, kW - 1 - p)],
        lhs_dilation=(s, s),
        dimension_numbers=('NCHW', 'OIHW', 'NCHW'),
        preferred_element_type=jnp.float32)


def _ref_forward(z, gen):
    def inorm_lrelu(x):
        m = x.mean(axis=(2, 3), keepdims=True)
        v = ((x - m) ** 2).mean(axis=(2, 3), keepdims=True)
        x = (x - m) / jnp.sqrt(v + IN_EPS)
        return jnp.where(x >= 0, x, LEAKY_SLOPE * x)
    x = inorm_lrelu(_ref_convT(z, gen.weights[0], 1, 0))
    for w in gen.weights[1:-1]:
        x = inorm_lrelu(_ref_convT(x, w, 2, 1))
    return _ref_convT(x, gen.weights[-1], 2, 1)


# --------------------------------- main ------------------------------------ #
if __name__ == "__main__":
    key = jax.random.PRNGKey(0)
    k_z, k_params = jax.random.split(key)

    # small config: image (1, 32, 32), z_dim=16, h_size=(32, 16, 8), batch=2
    image_size = (1, 32, 32)
    z_dim = 16
    h_size = (32, 16, 8)
    B = 2

    gen = GeneratorPallas(image_size, z_dim, h_size, k_params)
    z = jax.random.normal(k_z, (B, z_dim, 1, 1), jnp.float32)

    fwd = jax.jit(gen.__call__)
    out = jax.block_until_ready(fwd(z))
    assert out.shape == (B,) + image_size, out.shape

    ref = jax.block_until_ready(_ref_forward(z, gen))
    max_err = float(jnp.max(jnp.abs(out - ref)))
    # bf16 matmul operands (both paths) -> compare at a bf16-appropriate tol.
    assert max_err < 2e-2, f"mismatch vs reference: {max_err}"

    print("KERNEL_OK")
</pallas_src>

<mosaic_0001>
module attributes {stable_mosaic.version = 11 : i64} {
  func.func @kernel(%arg0: i32, %arg1: memref<1x1x256x16xbf16, #tpu.memory_space<vmem>>, %arg2: memref<1x32x256xbf16, #tpu.memory_space<vmem>>, %arg3: memref<1x1x32x16xbf16, #tpu.memory_space<vmem>>) attributes {dimension_semantics = [#tpu.dimension_semantics<parallel>], iteration_bounds = array<i64: 2>, scalar_prefetch = 0 : i64, scratch_operands = 0 : i64, tpu.core_type = #tpu.core_type<tc>, window_params = [{transform_indices = @transform_0, window_bounds = array<i64: 1, 1, 256, 16>}, {pipeline_mode = #tpu.pipeline_mode<synchronous>, transform_indices = @transform_1, window_bounds = array<i64: 1, 32, 256>}, {transform_indices = @transform_2, window_bounds = array<i64: 1, 1, 32, 16>}]} {
    %c0 = arith.constant 0 : index
    %c0_0 = arith.constant 0 : index
    %c0_1 = arith.constant 0 : index
    %0 = vector.load %arg2[%c0, %c0_0, %c0_1] : memref<1x32x256xbf16, #tpu.memory_space<vmem>>, vector<1x32x256xbf16>
    %1 = vector.shape_cast %0 : vector<1x32x256xbf16> to vector<32x256xbf16>
    %c0_2 = arith.constant 0 : index
    %c0_3 = arith.constant 0 : index
    %c0_4 = arith.constant 0 : index
    %c0_5 = arith.constant 0 : index
    %2 = vector.load %arg1[%c0_2, %c0_3, %c0_4, %c0_5] : memref<1x1x256x16xbf16, #tpu.memory_space<vmem>>, vector<1x1x256x16xbf16>
    %3 = vector.shape_cast %2 : vector<1x1x256x16xbf16> to vector<256x16xbf16>
    %cst = arith.constant dense<0.000000e+00> : vector<32x16xf32>
    %4 = tpu.matmul %1, %3, %cst {dimension_numbers = #tpu.dot_dimension_numbers<[1], [0], [0], [1], [0, 0, 1, 1], [], []>} : vector<32x256xbf16>, vector<256x16xbf16>, vector<32x16xf32> -> vector<32x16xf32>
    %cst_6 = arith.constant dense<0.000000e+00> : vector<32xf32>
    %5 = vector.multi_reduction <add>, %4, %cst_6 [1] : vector<32x16xf32> to vector<32xf32>
    %6 = vector.shape_cast %5 : vector<32xf32> to vector<32x1xf32>
    %cst_7 = arith.constant 6.250000e-02 : f32
    %7 = vector.broadcast %cst_7 : f32 to vector<32x1xf32>
    %8 = arith.mulf %6, %7 : vector<32x1xf32>
    %9 = vector.broadcast %8 : vector<32x1xf32> to vector<32x16xf32>
    %10 = arith.subf %4, %9 : vector<32x16xf32>
    %11 = arith.mulf %10, %10 : vector<32x16xf32>
    %cst_8 = arith.constant dense<0.000000e+00> : vector<32xf32>
    %12 = vector.multi_reduction <add>, %11, %cst_8 [1] : vector<32x16xf32> to vector<32xf32>
    %13 = vector.shape_cast %12 : vector<32xf32> to vector<32x1xf32>
    %cst_9 = arith.constant 6.250000e-02 : f32
    %14 = vector.broadcast %cst_9 : f32 to vector<32x1xf32>
    %15 = arith.mulf %13, %14 : vector<32x1xf32>
    %cst_10 = arith.constant 9.99999974E-6 : f32
    %16 = vector.broadcast %cst_10 : f32 to vector<32x1xf32>
    %17 = arith.addf %15, %16 : vector<32x1xf32>
    %18 = math.rsqrt %17 : vector<32x1xf32>
    %19 = vector.broadcast %18 : vector<32x1xf32> to vector<32x16xf32>
    %20 = arith.mulf %10, %19 : vector<32x16xf32>
    %cst_11 = arith.constant 0.00999999977 : f32
    %21 = vector.broadcast %cst_11 : f32 to vector<32x16xf32>
    %22 = arith.mulf %21, %20 : vector<32x16xf32>
    %23 = arith.maximumf %20, %22 : vector<32x16xf32>
    %24 = arith.truncf %23 : vector<32x16xf32> to vector<32x16xbf16>
    %c0_12 = arith.constant 0 : index
    %c0_13 = arith.constant 0 : index
    %c0_14 = arith.constant 0 : index
    %c0_15 = arith.constant 0 : index
    %25 = vector.load %arg3[%c0_12, %c0_13, %c0_14, %c0_15] : memref<1x1x32x16xbf16, #tpu.memory_space<vmem>>, vector<1x1x32x16xbf16>
    %26 = vector.shape_cast %25 : vector<1x1x32x16xbf16> to vector<32x16xbf16>
    %27 = vector.shape_cast %24 : vector<32x16xbf16> to vector<1x1x32x16xbf16>
    tpu.vector_store %arg3[%c0_12, %c0_13, %c0_14, %c0_15], %27 {strides = array<i32>} : memref<1x1x32x16xbf16, #tpu.memory_space<vmem>>, vector<1x1x32x16xbf16>,
    return
  }
  func.func @transform_0(%arg0: i32) -> (i32, i32, i32, i32) {
    %c0_i32 = arith.constant 0 : i32
    %c0_i32_0 = arith.constant 0 : i32
    %c0_i32_1 = arith.constant 0 : i32
    %c0_i32_2 = arith.constant 0 : i32
    return %arg0, %c0_i32, %c0_i32_0, %c0_i32_1 : i32, i32, i32, i32
  }
  func.func @transform_1(%arg0: i32) -> (i32, i32, i32) {
    %c0_i32 = arith.constant 0 : i32
    %c0_i32_0 = arith.constant 0 : i32
    %c0_i32_1 = arith.constant 0 : i32
    %c0_i32_2 = arith.constant 0 : i32
    return %c0_i32, %c0_i32_0, %c0_i32_1 : i32, i32, i32
  }
  func.func @transform_2(%arg0: i32) -> (i32, i32, i32, i32) {
    %c0_i32 = arith.constant 0 : i32
    %c0_i32_0 = arith.constant 0 : i32
    %c0_i32_1 = arith.constant 0 : i32
    %c0_i32_2 = arith.constant 0 : i32
    return %arg0, %c0_i32, %c0_i32_0, %c0_i32_1 : i32, i32, i32, i32
  }
}

module attributes {stable_mosaic.version = 11 : i64} {
  func.func @kernel(%arg0: i32, %arg1: memref<1x4x128x16xbf16, #tpu.memory_space<vmem>>, %arg2: memref<4x16x128xbf16, #tpu.memory_space<vmem>>, %arg3: memref<1x4x16x16xbf16, #tpu.memory_space<vmem>>) attributes {dimension_semantics = [#tpu.dimension_semantics<parallel>], iteration_bounds = array<i64: 2>, scalar_prefetch = 0 : i64, scratch_operands = 0 : i64, tpu.core_type = #tpu.core_type<tc>, window_params = [{transform_indices = @transform_0, window_bounds = array<i64: 1, 4, 128, 16>}, {pipeline_mode = #tpu.pipeline_mode<synchronous>, transform_indices = @transform_1, window_bounds = array<i64: 4, 16, 128>}, {transform_indices = @transform_2, window_bounds = array<i64: 1, 4, 16, 16>}]} {
    %c0 = arith.constant 0 : index
    %c0_0 = arith.constant 0 : index
    %c0_1 = arith.constant 0 : index
    %0 = vector.load %arg2[%c0, %c0_0, %c0_1] : memref<4x16x128xbf16, #tpu.memory_space<vmem>>, vector<1x16x128xbf16>
    %1 = vector.shape_cast %0 : vector<1x16x128xbf16> to vector<16x128xbf16>
    %c0_2 = arith.constant 0 : index
    %c0_3 = arith.constant 0 : index
    %c0_4 = arith.constant 0 : index
    %c0_5 = arith.constant 0 : index
    %2 = vector.load %arg1[%c0_2, %c0_3, %c0_4, %c0_5] : memref<1x4x128x16xbf16, #tpu.memory_space<vmem>>, vector<1x1x128x16xbf16>
    %3 = vector.shape_cast %2 : vector<1x1x128x16xbf16> to vector<128x16xbf16>
    %cst = arith.constant dense<0.000000e+00> : vector<16x16xf32>
    %4 = tpu.matmul %1, %3, %cst {dimension_numbers = #tpu.dot_dimension_numbers<[1], [0], [0], [1], [0, 0, 1, 1], [], []>} : vector<16x128xbf16>, vector<128x16xbf16>, vector<16x16xf32> -> vector<16x16xf32>
    %c1 = arith.constant 1 : index
    %c0_6 = arith.constant 0 : index
    %c0_7 = arith.constant 0 : index
    %5 = vector.load %arg2[%c1, %c0_6, %c0_7] : memref<4x16x128xbf16, #tpu.memory_space<vmem>>, vector<1x16x128xbf16>
    %6 = vector.shape_cast %5 : vector<1x16x128xbf16> to vector<16x128xbf16>
    %c0_8 = arith.constant 0 : index
    %c1_9 = arith.constant 1 : index
    %c0_10 = arith.constant 0 : index
    %c0_11 = arith.constant 0 : index
    %7 = vector.load %arg1[%c0_8, %c1_9, %c0_10, %c0_11] : memref<1x4x128x16xbf16, #tpu.memory_space<vmem>>, vector<1x1x128x16xbf16>
    %8 = vector.shape_cast %7 : vector<1x1x128x16xbf16> to vector<128x16xbf16>
    %cst_12 = arith.constant dense<0.000000e+00> : vector<16x16xf32>
    %9 = tpu.matmul %6, %8, %cst_12 {dimension_numbers = #tpu.dot_dimension_numbers<[1], [0], [0], [1], [0, 0, 1, 1], [], []>} : vector<16x128xbf16>, vector<128x16xbf16>, vector<16x16xf32> -> vector<16x16xf32>
    %c2 = arith.constant 2 : index
    %c0_13 = arith.constant 0 : index
    %c0_14 = arith.constant 0 : index
    %10 = vector.load %arg2[%c2, %c0_13, %c0_14] : memref<4x16x128xbf16, #tpu.memory_space<vmem>>, vector<1x16x128xbf16>
    %11 = vector.shape_cast %10 : vector<1x16x128xbf16> to vector<16x128xbf16>
    %c0_15 = arith.constant 0 : index
    %c2_16 = arith.constant 2 : index
    %c0_17 = arith.constant 0 : index
    %c0_18 = arith.constant 0 : index
    %12 = vector.load %arg1[%c0_15, %c2_16, %c0_17, %c0_18] : memref<1x4x128x16xbf16, #tpu.memory_space<vmem>>, vector<1x1x128x16xbf16>
    %13 = vector.shape_cast %12 : vector<1x1x128x16xbf16> to vector<128x16xbf16>
    %cst_19 = arith.constant dense<0.000000e+00> : vector<16x16xf32>
    %14 = tpu.matmul %11, %13, %cst_19 {dimension_numbers = #tpu.dot_dimension_numbers<[1], [0], [0], [1], [0, 0, 1, 1], [], []>} : vector<16x128xbf16>, vector<128x16xbf16>, vector<16x16xf32> -> vector<16x16xf32>
    %c3 = arith.constant 3 : index
    %c0_20 = arith.constant 0 : index
    %c0_21 = arith.constant 0 : index
    %15 = vector.load %arg2[%c3, %c0_20, %c0_21] : memref<4x16x128xbf16, #tpu.memory_space<vmem>>, vector<1x16x128xbf16>
    %16 = vector.shape_cast %15 : vector<1x16x128xbf16> to vector<16x128xbf16>
    %c0_22 = arith.constant 0 : index
    %c3_23 = arith.constant 3 : index
    %c0_24 = arith.constant 0 : index
    %c0_25 = arith.constant 0 : index
    %17 = vector.load %arg1[%c0_22, %c3_23, %c0_24, %c0_25] : memref<1x4x128x16xbf16, #tpu.memory_space<vmem>>, vector<1x1x128x16xbf16>
    %18 = vector.shape_cast %17 : vector<1x1x128x16xbf16> to vector<128x16xbf16>
    %cst_26 = arith.constant dense<0.000000e+00> : vector<16x16xf32>
    %19 = tpu.matmul %16, %18, %cst_26 {dimension_numbers = #tpu.dot_dimension_numbers<[1], [0], [0], [1], [0, 0, 1, 1], [], []>} : vector<16x128xbf16>, vector<128x16xbf16>, vector<16x16xf32> -> vector<16x16xf32>
    %cst_27 = arith.constant dense<0.000000e+00> : vector<16xf32>
    %20 = vector.multi_reduction <add>, %4, %cst_27 [1] : vector<16x16xf32> to vector<16xf32>
    %21 = vector.shape_cast %20 : vector<16xf32> to vector<16x1xf32>
    %cst_28 = arith.constant dense<0.000000e+00> : vector<16xf32>
    %22 = vector.multi_reduction <add>, %9, %cst_28 [1] : vector<16x16xf32> to vector<16xf32>
    %23 = vector.shape_cast %22 : vector<16xf32> to vector<16x1xf32>
    %24 = arith.addf %21, %23 : vector<16x1xf32>
    %cst_29 = arith.constant dense<0.000000e+00> : vector<16xf32>
    %25 = vector.multi_reduction <add>, %14, %cst_29 [1] : vector<16x16xf32> to vector<16xf32>
    %26 = vector.shape_cast %25 : vector<16xf32> to vector<16x1xf32>
    %27 = arith.addf %24, %26 : vector<16x1xf32>
    %cst_30 = arith.constant dense<0.000000e+00> : vector<16xf32>
    %28 = vector.multi_reduction <add>, %19, %cst_30 [1] : vector<16x16xf32> to vector<16xf32>
    %29 = vector.shape_cast %28 : vector<16xf32> to vector<16x1xf32>
    %30 = arith.addf %27, %29 : vector<16x1xf32>
    %cst_31 = arith.constant 1.562500e-02 : f32
    %31 = vector.broadcast %cst_31 : f32 to vector<16x1xf32>
    %32 = arith.mulf %30, %31 : vector<16x1xf32>
    %33 = vector.broadcast %32 : vector<16x1xf32> to vector<16x16xf32>
    %34 = arith.subf %4, %33 : vector<16x16xf32>
    %35 = vector.broadcast %32 : vector<16x1xf32> to vector<16x16xf32>
    %36 = arith.subf %9, %35 : vector<16x16xf32>
    %37 = vector.broadcast %32 : vector<16x1xf32> to vector<16x16xf32>
    %38 = arith.subf %14, %37 : vector<16x16xf32>
    %39 = vector.broadcast %32 : vector<16x1xf32> to vector<16x16xf32>
    %40 = arith.subf %19, %39 : vector<16x16xf32>
    %41 = arith.mulf %34, %34 : vector<16x16xf32>
    %cst_32 = arith.constant dense<0.000000e+00> : vector<16xf32>
    %42 = vector.multi_reduction <add>, %41, %cst_32 [1] : vector<16x16xf32> to vector<16xf32>
    %43 = vector.shape_cast %42 : vector<16xf32> to vector<16x1xf32>
    %44 = arith.mulf %36, %36 : vector<16x16xf32>
    %cst_33 = arith.constant dense<0.000000e+00> : vector<16xf32>
    %45 = vector.multi_reduction <add>, %44, %cst_33 [1] : vector<16x16xf32> to vector<16xf32>
    %46 = vector.shape_cast %45 : vector<16xf32> to vector<16x1xf32>
    %47 = arith.addf %43, %46 : vector<16x1xf32>
    %48 = arith.mulf %38, %38 : vector<16x16xf32>
    %cst_34 = arith.constant dense<0.000000e+00> : vector<16xf32>
    %49 = vector.multi_reduction <add>, %48, %cst_34 [1] : vector<16x16xf32> to vector<16xf32>
    %50 = vector.shape_cast %49 : vector<16xf32> to vector<16x1xf32>
    %51 = arith.addf %47, %50 : vector<16x1xf32>
    %52 = arith.mulf %40, %40 : vector<16x16xf32>
    %cst_35 = arith.constant dense<0.000000e+00> : vector<16xf32>
    %53 = vector.multi_reduction <add>, %52, %cst_35 [1] : vector<16x16xf32> to vector<16xf32>
    %54 = vector.shape_cast %53 : vector<16xf32> to vector<16x1xf32>
    %55 = arith.addf %51, %54 : vector<16x1xf32>
    %cst_36 = arith.constant 1.562500e-02 : f32
    %56 = vector.broadcast %cst_36 : f32 to vector<16x1xf32>
    %57 = arith.mulf %55, %56 : vector<16x1xf32>
    %cst_37 = arith.constant 9.99999974E-6 : f32
    %58 = vector.broadcast %cst_37 : f32 to vector<16x1xf32>
    %59 = arith.addf %57, %58 : vector<16x1xf32>
    %60 = math.rsqrt %59 : vector<16x1xf32>
    %61 = vector.broadcast %60 : vector<16x1xf32> to vector<16x16xf32>
    %62 = arith.mulf %34, %61 : vector<16x16xf32>
    %cst_38 = arith.constant 0.00999999977 : f32
    %63 = vector.broadcast %cst_38 : f32 to vector<16x16xf32>
    %64 = arith.mulf %63, %62 : vector<16x16xf32>
    %65 = arith.maximumf %62, %64 : vector<16x16xf32>
    %66 = arith.truncf %65 : vector<16x16xf32> to vector<16x16xbf16>
    %c0_39 = arith.constant 0 : index
    %c0_40 = arith.constant 0 : index
    %c0_41 = arith.constant 0 : index
    %c0_42 = arith.constant 0 : index
    %67 = vector.load %arg3[%c0_39, %c0_40, %c0_41, %c0_42] : memref<1x4x16x16xbf16, #tpu.memory_space<vmem>>, vector<1x1x16x16xbf16>
    %68 = vector.shape_cast %67 : vector<1x1x16x16xbf16> to vector<16x16xbf16>
    %69 = vector.shape_cast %66 : vector<16x16xbf16> to vector<1x1x16x16xbf16>
    tpu.vector_store %arg3[%c0_39, %c0_40, %c0_41, %c0_42], %69 {strides = array<i32>} : memref<1x4x16x16xbf16, #tpu.memory_space<vmem>>, vector<1x1x16x16xbf16>,
    %70 = vector.broadcast %60 : vector<16x1xf32> to vector<16x16xf32>
    %71 = arith.mulf %36, %70 : vector<16x16xf32>
    %cst_43 = arith.constant 0.00999999977 : f32
    %72 = vector.broadcast %cst_43 : f32 to vector<16x16xf32>
    %73 = arith.mulf %72, %71 : vector<16x16xf32>
    %74 = arith.maximumf %71, %73 : vector<16x16xf32>
    %75 = arith.truncf %74 : vector<16x16xf32> to vector<16x16xbf16>
    %c0_44 = arith.constant 0 : index
    %c1_45 = arith.constant 1 : index
    %c0_46 = arith.constant 0 : index
    %c0_47 = arith.constant 0 : index
    %76 = vector.load %arg3[%c0_44, %c1_45, %c0_46, %c0_47] : memref<1x4x16x16xbf16, #tpu.memory_space<vmem>>, vector<1x1x16x16xbf16>
    %77 = vector.shape_cast %76 : vector<1x1x16x16xbf16> to vector<16x16xbf16>
    %78 = vector.shape_cast %75 : vector<16x16xbf16> to vector<1x1x16x16xbf16>
    tpu.vector_store %arg3[%c0_44, %c1_45, %c0_46, %c0_47], %78 {strides = array<i32>} : memref<1x4x16x16xbf16, #tpu.memory_space<vmem>>, vector<1x1x16x16xbf16>,
    %79 = vector.broadcast %60 : vector<16x1xf32> to vector<16x16xf32>
    %80 = arith.mulf %38, %79 : vector<16x16xf32>
    %cst_48 = arith.constant 0.00999999977 : f32
    %81 = vector.broadcast %cst_48 : f32 to vector<16x16xf32>
    %82 = arith.mulf %81, %80 : vector<16x16xf32>
    %83 = arith.maximumf %80, %82 : vector<16x16xf32>
    %84 = arith.truncf %83 : vector<16x16xf32> to vector<16x16xbf16>
    %c0_49 = arith.constant 0 : index
    %c2_50 = arith.constant 2 : index
    %c0_51 = arith.constant 0 : index
    %c0_52 = arith.constant 0 : index
    %85 = vector.load %arg3[%c0_49, %c2_50, %c0_51, %c0_52] : memref<1x4x16x16xbf16, #tpu.memory_space<vmem>>, vector<1x1x16x16xbf16>
    %86 = vector.shape_cast %85 : vector<1x1x16x16xbf16> to vector<16x16xbf16>
    %87 = vector.shape_cast %84 : vector<16x16xbf16> to vector<1x1x16x16xbf16>
    tpu.vector_store %arg3[%c0_49, %c2_50, %c0_51, %c0_52], %87 {strides = array<i32>} : memref<1x4x16x16xbf16, #tpu.memory_space<vmem>>, vector<1x1x16x16xbf16>,
    %88 = vector.broadcast %60 : vector<16x1xf32> to vector<16x16xf32>
    %89 = arith.mulf %40, %88 : vector<16x16xf32>
    %cst_53 = arith.constant 0.00999999977 : f32
    %90 = vector.broadcast %cst_53 : f32 to vector<16x16xf32>
    %91 = arith.mulf %90, %89 : vector<16x16xf32>
    %92 = arith.maximumf %89, %91 : vector<16x16xf32>
    %93 = arith.truncf %92 : vector<16x16xf32> to vector<16x16xbf16>
    %c0_54 = arith.constant 0 : index
    %c3_55 = arith.constant 3 : index
    %c0_56 = arith.constant 0 : index
    %c0_57 = arith.constant 0 : index
    %94 = vector.load %arg3[%c0_54, %c3_55, %c0_56, %c0_57] : memref<1x4x16x16xbf16, #tpu.memory_space<vmem>>, vector<1x1x16x16xbf16>
    %95 = vector.shape_cast %94 : vector<1x1x16x16xbf16> to vector<16x16xbf16>
    %96 = vector.shape_cast %93 : vector<16x16xbf16> to vector<1x1x16x16xbf16>
    tpu.vector_store %arg3[%c0_54, %c3_55, %c0_56, %c0_57], %96 {strides = array<i32>} : memref<1x4x16x16xbf16, #tpu.memory_space<vmem>>, vector<1x1x16x16xbf16>,
    return
  }
  func.func @transform_0(%arg0: i32) -> (i32, i32, i32, i32) {
    %c0_i32 = arith.constant 0 : i32
    %c0_i32_0 = arith.constant 0 : i32
    %c0_i32_1 = arith.constant 0 : i32
    %c0_i32_2 = arith.constant 0 : i32
    return %arg0, %c0_i32, %c0_i32_0, %c0_i32_1 : i32, i32, i32, i32
  }
  func.func @transform_1(%arg0: i32) -> (i32, i32, i32) {
    %c0_i32 = arith.constant 0 : i32
    %c0_i32_0 = arith.constant 0 : i32
    %c0_i32_1 = arith.constant 0 : i32
    %c0_i32_2 = arith.constant 0 : i32
    return %c0_i32, %c0_i32_0, %c0_i32_1 : i32, i32, i32
  }
  func.func @transform_2(%arg0: i32) -> (i32, i32, i32, i32) {
    %c0_i32 = arith.constant 0 : i32
    %c0_i32_0 = arith.constant 0 : i32
    %c0_i32_1 = arith.constant 0 : i32
    %c0_i32_2 = arith.constant 0 : i32
    return %arg0, %c0_i32, %c0_i32_0, %c0_i32_1 : i32, i32, i32, i32
  }
}

module attributes {stable_mosaic.version = 11 : i64} {
  func.func @kernel(%arg0: i32, %arg1: memref<1x4x64x64xbf16, #tpu.memory_space<vmem>>, %arg2: memref<4x8x64xbf16, #tpu.memory_space<vmem>>, %arg3: memref<1x4x8x64xbf16, #tpu.memory_space<vmem>>) attributes {dimension_semantics = [#tpu.dimension_semantics<parallel>], iteration_bounds = array<i64: 2>, scalar_prefetch = 0 : i64, scratch_operands = 0 : i64, tpu.core_type = #tpu.core_type<tc>, window_params = [{transform_indices = @transform_0, window_bounds = array<i64: 1, 4, 64, 64>}, {pipeline_mode = #tpu.pipeline_mode<synchronous>, transform_indices = @transform_1, window_bounds = array<i64: 4, 8, 64>}, {transform_indices = @transform_2, window_bounds = array<i64: 1, 4, 8, 64>}]} {
    %c0 = arith.constant 0 : index
    %c0_0 = arith.constant 0 : index
    %c0_1 = arith.constant 0 : index
    %0 = vector.load %arg2[%c0, %c0_0, %c0_1] : memref<4x8x64xbf16, #tpu.memory_space<vmem>>, vector<1x8x64xbf16>
    %1 = vector.shape_cast %0 : vector<1x8x64xbf16> to vector<8x64xbf16>
    %c0_2 = arith.constant 0 : index
    %c0_3 = arith.constant 0 : index
    %c0_4 = arith.constant 0 : index
    %c0_5 = arith.constant 0 : index
    %2 = vector.load %arg1[%c0_2, %c0_3, %c0_4, %c0_5] : memref<1x4x64x64xbf16, #tpu.memory_space<vmem>>, vector<1x1x64x64xbf16>
    %3 = vector.shape_cast %2 : vector<1x1x64x64xbf16> to vector<64x64xbf16>
    %cst = arith.constant dense<0.000000e+00> : vector<8x64xf32>
    %4 = tpu.matmul %1, %3, %cst {dimension_numbers = #tpu.dot_dimension_numbers<[1], [0], [0], [1], [0, 0, 1, 1], [], []>} : vector<8x64xbf16>, vector<64x64xbf16>, vector<8x64xf32> -> vector<8x64xf32>
    %c1 = arith.constant 1 : index
    %c0_6 = arith.constant 0 : index
    %c0_7 = arith.constant 0 : index
    %5 = vector.load %arg2[%c1, %c0_6, %c0_7] : memref<4x8x64xbf16, #tpu.memory_space<vmem>>, vector<1x8x64xbf16>
    %6 = vector.shape_cast %5 : vector<1x8x64xbf16> to vector<8x64xbf16>
    %c0_8 = arith.constant 0 : index
    %c1_9 = arith.constant 1 : index
    %c0_10 = arith.constant 0 : index
    %c0_11 = arith.constant 0 : index
    %7 = vector.load %arg1[%c0_8, %c1_9, %c0_10, %c0_11] : memref<1x4x64x64xbf16, #tpu.memory_space<vmem>>, vector<1x1x64x64xbf16>
    %8 = vector.shape_cast %7 : vector<1x1x64x64xbf16> to vector<64x64xbf16>
    %cst_12 = arith.constant dense<0.000000e+00> : vector<8x64xf32>
    %9 = tpu.matmul %6, %8, %cst_12 {dimension_numbers = #tpu.dot_dimension_numbers<[1], [0], [0], [1], [0, 0, 1, 1], [], []>} : vector<8x64xbf16>, vector<64x64xbf16>, vector<8x64xf32> -> vector<8x64xf32>
    %c2 = arith.constant 2 : index
    %c0_13 = arith.constant 0 : index
    %c0_14 = arith.constant 0 : index
    %10 = vector.load %arg2[%c2, %c0_13, %c0_14] : memref<4x8x64xbf16, #tpu.memory_space<vmem>>, vector<1x8x64xbf16>
    %11 = vector.shape_cast %10 : vector<1x8x64xbf16> to vector<8x64xbf16>
    %c0_15 = arith.constant 0 : index
    %c2_16 = arith.constant 2 : index
    %c0_17 = arith.constant 0 : index
    %c0_18 = arith.constant 0 : index
    %12 = vector.load %arg1[%c0_15, %c2_16, %c0_17, %c0_18] : memref<1x4x64x64xbf16, #tpu.memory_space<vmem>>, vector<1x1x64x64xbf16>
    %13 = vector.shape_cast %12 : vector<1x1x64x64xbf16> to vector<64x64xbf16>
    %cst_19 = arith.constant dense<0.000000e+00> : vector<8x64xf32>
    %14 = tpu.matmul %11, %13, %cst_19 {dimension_numbers = #tpu.dot_dimension_numbers<[1], [0], [0], [1], [0, 0, 1, 1], [], []>} : vector<8x64xbf16>, vector<64x64xbf16>, vector<8x64xf32> -> vector<8x64xf32>
    %c3 = arith.constant 3 : index
    %c0_20 = arith.constant 0 : index
    %c0_21 = arith.constant 0 : index
    %15 = vector.load %arg2[%c3, %c0_20, %c0_21] : memref<4x8x64xbf16, #tpu.memory_space<vmem>>, vector<1x8x64xbf16>
    %16 = vector.shape_cast %15 : vector<1x8x64xbf16> to vector<8x64xbf16>
    %c0_22 = arith.constant 0 : index
    %c3_23 = arith.constant 3 : index
    %c0_24 = arith.constant 0 : index
    %c0_25 = arith.constant 0 : index
    %17 = vector.load %arg1[%c0_22, %c3_23, %c0_24, %c0_25] : memref<1x4x64x64xbf16, #tpu.memory_space<vmem>>, vector<1x1x64x64xbf16>
    %18 = vector.shape_cast %17 : vector<1x1x64x64xbf16> to vector<64x64xbf16>
    %cst_26 = arith.constant dense<0.000000e+00> : vector<8x64xf32>
    %19 = tpu.matmul %16, %18, %cst_26 {dimension_numbers = #tpu.dot_dimension_numbers<[1], [0], [0], [1], [0, 0, 1, 1], [], []>} : vector<8x64xbf16>, vector<64x64xbf16>, vector<8x64xf32> -> vector<8x64xf32>
    %cst_27 = arith.constant dense<0.000000e+00> : vector<8xf32>
    %20 = vector.multi_reduction <add>, %4, %cst_27 [1] : vector<8x64xf32> to vector<8xf32>
    %21 = vector.shape_cast %20 : vector<8xf32> to vector<8x1xf32>
    %cst_28 = arith.constant dense<0.000000e+00> : vector<8xf32>
    %22 = vector.multi_reduction <add>, %9, %cst_28 [1] : vector<8x64xf32> to vector<8xf32>
    %23 = vector.shape_cast %22 : vector<8xf32> to vector<8x1xf32>
    %24 = arith.addf %21, %23 : vector<8x1xf32>
    %cst_29 = arith.constant dense<0.000000e+00> : vector<8xf32>
    %25 = vector.multi_reduction <add>, %14, %cst_29 [1] : vector<8x64xf32> to vector<8xf32>
    %26 = vector.shape_cast %25 : vector<8xf32> to vector<8x1xf32>
    %27 = arith.addf %24, %26 : vector<8x1xf32>
    %cst_30 = arith.constant dense<0.000000e+00> : vector<8xf32>
    %28 = vector.multi_reduction <add>, %19, %cst_30 [1] : vector<8x64xf32> to vector<8xf32>
    %29 = vector.shape_cast %28 : vector<8xf32> to vector<8x1xf32>
    %30 = arith.addf %27, %29 : vector<8x1xf32>
    %cst_31 = arith.constant 3.906250e-03 : f32
    %31 = vector.broadcast %cst_31 : f32 to vector<8x1xf32>
    %32 = arith.mulf %30, %31 : vector<8x1xf32>
    %33 = vector.broadcast %32 : vector<8x1xf32> to vector<8x64xf32>
    %34 = arith.subf %4, %33 : vector<8x64xf32>
    %35 = vector.broadcast %32 : vector<8x1xf32> to vector<8x64xf32>
    %36 = arith.subf %9, %35 : vector<8x64xf32>
    %37 = vector.broadcast %32 : vector<8x1xf32> to vector<8x64xf32>
    %38 = arith.subf %14, %37 : vector<8x64xf32>
    %39 = vector.broadcast %32 : vector<8x1xf32> to vector<8x64xf32>
    %40 = arith.subf %19, %39 : vector<8x64xf32>
    %41 = arith.mulf %34, %34 : vector<8x64xf32>
    %cst_32 = arith.constant dense<0.000000e+00> : vector<8xf32>
    %42 = vector.multi_reduction <add>, %41, %cst_32 [1] : vector<8x64xf32> to vector<8xf32>
    %43 = vector.shape_cast %42 : vector<8xf32> to vector<8x1xf32>
    %44 = arith.mulf %36, %36 : vector<8x64xf32>
    %cst_33 = arith.constant dense<0.000000e+00> : vector<8xf32>
    %45 = vector.multi_reduction <add>, %44, %cst_33 [1] : vector<8x64xf32> to vector<8xf32>
    %46 = vector.shape_cast %45 : vector<8xf32> to vector<8x1xf32>
    %47 = arith.addf %43, %46 : vector<8x1xf32>
    %48 = arith.mulf %38, %38 : vector<8x64xf32>
    %cst_34 = arith.constant dense<0.000000e+00> : vector<8xf32>
    %49 = vector.multi_reduction <add>, %48, %cst_34 [1] : vector<8x64xf32> to vector<8xf32>
    %50 = vector.shape_cast %49 : vector<8xf32> to vector<8x1xf32>
    %51 = arith.addf %47, %50 : vector<8x1xf32>
    %52 = arith.mulf %40, %40 : vector<8x64xf32>
    %cst_35 = arith.constant dense<0.000000e+00> : vector<8xf32>
    %53 = vector.multi_reduction <add>, %52, %cst_35 [1] : vector<8x64xf32> to vector<8xf32>
    %54 = vector.shape_cast %53 : vector<8xf32> to vector<8x1xf32>
    %55 = arith.addf %51, %54 : vector<8x1xf32>
    %cst_36 = arith.constant 3.906250e-03 : f32
    %56 = vector.broadcast %cst_36 : f32 to vector<8x1xf32>
    %57 = arith.mulf %55, %56 : vector<8x1xf32>
    %cst_37 = arith.constant 9.99999974E-6 : f32
    %58 = vector.broadcast %cst_37 : f32 to vector<8x1xf32>
    %59 = arith.addf %57, %58 : vector<8x1xf32>
    %60 = math.rsqrt %59 : vector<8x1xf32>
    %61 = vector.broadcast %60 : vector<8x1xf32> to vector<8x64xf32>
    %62 = arith.mulf %34, %61 : vector<8x64xf32>
    %cst_38 = arith.constant 0.00999999977 : f32
    %63 = vector.broadcast %cst_38 : f32 to vector<8x64xf32>
    %64 = arith.mulf %63, %62 : vector<8x64xf32>
    %65 = arith.maximumf %62, %64 : vector<8x64xf32>
    %66 = arith.truncf %65 : vector<8x64xf32> to vector<8x64xbf16>
    %c0_39 = arith.constant 0 : index
    %c0_40 = arith.constant 0 : index
    %c0_41 = arith.constant 0 : index
    %c0_42 = arith.constant 0 : index
    %67 = vector.load %arg3[%c0_39, %c0_40, %c0_41, %c0_42] : memref<1x4x8x64xbf16, #tpu.memory_space<vmem>>, vector<1x1x8x64xbf16>
    %68 = vector.shape_cast %67 : vector<1x1x8x64xbf16> to vector<8x64xbf16>
    %69 = vector.shape_cast %66 : vector<8x64xbf16> to vector<1x1x8x64xbf16>
    tpu.vector_store %arg3[%c0_39, %c0_40, %c0_41, %c0_42], %69 {strides = array<i32>} : memref<1x4x8x64xbf16, #tpu.memory_space<vmem>>, vector<1x1x8x64xbf16>,
    %70 = vector.broadcast %60 : vector<8x1xf32> to vector<8x64xf32>
    %71 = arith.mulf %36, %70 : vector<8x64xf32>
    %cst_43 = arith.constant 0.00999999977 : f32
    %72 = vector.broadcast %cst_43 : f32 to vector<8x64xf32>
    %73 = arith.mulf %72, %71 : vector<8x64xf32>
    %74 = arith.maximumf %71, %73 : vector<8x64xf32>
    %75 = arith.truncf %74 : vector<8x64xf32> to vector<8x64xbf16>
    %c0_44 = arith.constant 0 : index
    %c1_45 = arith.constant 1 : index
    %c0_46 = arith.constant 0 : index
    %c0_47 = arith.constant 0 : index
    %76 = vector.load %arg3[%c0_44, %c1_45, %c0_46, %c0_47] : memref<1x4x8x64xbf16, #tpu.memory_space<vmem>>, vector<1x1x8x64xbf16>
    %77 = vector.shape_cast %76 : vector<1x1x8x64xbf16> to vector<8x64xbf16>
    %78 = vector.shape_cast %75 : vector<8x64xbf16> to vector<1x1x8x64xbf16>
    tpu.vector_store %arg3[%c0_44, %c1_45, %c0_46, %c0_47], %78 {strides = array<i32>} : memref<1x4x8x64xbf16, #tpu.memory_space<vmem>>, vector<1x1x8x64xbf16>,
    %79 = vector.broadcast %60 : vector<8x1xf32> to vector<8x64xf32>
    %80 = arith.mulf %38, %79 : vector<8x64xf32>
    %cst_48 = arith.constant 0.00999999977 : f32
    %81 = vector.broadcast %cst_48 : f32 to vector<8x64xf32>
    %82 = arith.mulf %81, %80 : vector<8x64xf32>
    %83 = arith.maximumf %80, %82 : vector<8x64xf32>
    %84 = arith.truncf %83 : vector<8x64xf32> to vector<8x64xbf16>
    %c0_49 = arith.constant 0 : index
    %c2_50 = arith.constant 2 : index
    %c0_51 = arith.constant 0 : index
    %c0_52 = arith.constant 0 : index
    %85 = vector.load %arg3[%c0_49, %c2_50, %c0_51, %c0_52] : memref<1x4x8x64xbf16, #tpu.memory_space<vmem>>, vector<1x1x8x64xbf16>
    %86 = vector.shape_cast %85 : vector<1x1x8x64xbf16> to vector<8x64xbf16>
    %87 = vector.shape_cast %84 : vector<8x64xbf16> to vector<1x1x8x64xbf16>
    tpu.vector_store %arg3[%c0_49, %c2_50, %c0_51, %c0_52], %87 {strides = array<i32>} : memref<1x4x8x64xbf16, #tpu.memory_space<vmem>>, vector<1x1x8x64xbf16>,
    %88 = vector.broadcast %60 : vector<8x1xf32> to vector<8x64xf32>
    %89 = arith.mulf %40, %88 : vector<8x64xf32>
    %cst_53 = arith.constant 0.00999999977 : f32
    %90 = vector.broadcast %cst_53 : f32 to vector<8x64xf32>
    %91 = arith.mulf %90, %89 : vector<8x64xf32>
    %92 = arith.maximumf %89, %91 : vector<8x64xf32>
    %93 = arith.truncf %92 : vector<8x64xf32> to vector<8x64xbf16>
    %c0_54 = arith.constant 0 : index
    %c3_55 = arith.constant 3 : index
    %c0_56 = arith.constant 0 : index
    %c0_57 = arith.constant 0 : index
    %94 = vector.load %arg3[%c0_54, %c3_55, %c0_56, %c0_57] : memref<1x4x8x64xbf16, #tpu.memory_space<vmem>>, vector<1x1x8x64xbf16>
    %95 = vector.shape_cast %94 : vector<1x1x8x64xbf16> to vector<8x64xbf16>
    %96 = vector.shape_cast %93 : vector<8x64xbf16> to vector<1x1x8x64xbf16>
    tpu.vector_store %arg3[%c0_54, %c3_55, %c0_56, %c0_57], %96 {strides = array<i32>} : memref<1x4x8x64xbf16, #tpu.memory_space<vmem>>, vector<1x1x8x64xbf16>,
    return
  }
  func.func @transform_0(%arg0: i32) -> (i32, i32, i32, i32) {
    %c0_i32 = arith.constant 0 : i32
    %c0_i32_0 = arith.constant 0 : i32
    %c0_i32_1 = arith.constant 0 : i32
    %c0_i32_2 = arith.constant 0 : i32
    return %arg0, %c0_i32, %c0_i32_0, %c0_i32_1 : i32, i32, i32, i32
  }
  func.func @transform_1(%arg0: i32) -> (i32, i32, i32) {
    %c0_i32 = arith.constant 0 : i32
    %c0_i32_0 = arith.constant 0 : i32
    %c0_i32_1 = arith.constant 0 : i32
    %c0_i32_2 = arith.constant 0 : i32
    return %c0_i32, %c0_i32_0, %c0_i32_1 : i32, i32, i32
  }
  func.func @transform_2(%arg0: i32) -> (i32, i32, i32, i32) {
    %c0_i32 = arith.constant 0 : i32
    %c0_i32_0 = arith.constant 0 : i32
    %c0_i32_1 = arith.constant 0 : i32
    %c0_i32_2 = arith.constant 0 : i32
    return %arg0, %c0_i32, %c0_i32_0, %c0_i32_1 : i32, i32, i32, i32
  }
}

module attributes {stable_mosaic.version = 11 : i64} {
  func.func @kernel(%arg0: i32, %arg1: memref<1x4x32x256xbf16, #tpu.memory_space<vmem>>, %arg2: memref<4x8x32xbf16, #tpu.memory_space<vmem>>, %arg3: memref<1x4x8x256xf32, #tpu.memory_space<vmem>>) attributes {dimension_semantics = [#tpu.dimension_semantics<parallel>], iteration_bounds = array<i64: 2>, scalar_prefetch = 0 : i64, scratch_operands = 0 : i64, tpu.core_type = #tpu.core_type<tc>, window_params = [{transform_indices = @transform_0, window_bounds = array<i64: 1, 4, 32, 256>}, {pipeline_mode = #tpu.pipeline_mode<synchronous>, transform_indices = @transform_1, window_bounds = array<i64: 4, 8, 32>}, {transform_indices = @transform_2, window_bounds = array<i64: 1, 4, 8, 256>}]} {
    %c0 = arith.constant 0 : index
    %c0_0 = arith.constant 0 : index
    %c0_1 = arith.constant 0 : index
    %0 = vector.load %arg2[%c0, %c0_0, %c0_1] : memref<4x8x32xbf16, #tpu.memory_space<vmem>>, vector<1x8x32xbf16>
    %1 = vector.shape_cast %0 : vector<1x8x32xbf16> to vector<8x32xbf16>
    %c0_2 = arith.constant 0 : index
    %c0_3 = arith.constant 0 : index
    %c0_4 = arith.constant 0 : index
    %c0_5 = arith.constant 0 : index
    %2 = vector.load %arg1[%c0_2, %c0_3, %c0_4, %c0_5] : memref<1x4x32x256xbf16, #tpu.memory_space<vmem>>, vector<1x1x32x256xbf16>
    %3 = vector.shape_cast %2 : vector<1x1x32x256xbf16> to vector<32x256xbf16>
    %cst = arith.constant dense<0.000000e+00> : vector<8x256xf32>
    %4 = tpu.matmul %1, %3, %cst {dimension_numbers = #tpu.dot_dimension_numbers<[1], [0], [0], [1], [0, 0, 1, 1], [], []>} : vector<8x32xbf16>, vector<32x256xbf16>, vector<8x256xf32> -> vector<8x256xf32>
    %c1 = arith.constant 1 : index
    %c0_6 = arith.constant 0 : index
    %c0_7 = arith.constant 0 : index
    %5 = vector.load %arg2[%c1, %c0_6, %c0_7] : memref<4x8x32xbf16, #tpu.memory_space<vmem>>, vector<1x8x32xbf16>
    %6 = vector.shape_cast %5 : vector<1x8x32xbf16> to vector<8x32xbf16>
    %c0_8 = arith.constant 0 : index
    %c1_9 = arith.constant 1 : index
    %c0_10 = arith.constant 0 : index
    %c0_11 = arith.constant 0 : index
    %7 = vector.load %arg1[%c0_8, %c1_9, %c0_10, %c0_11] : memref<1x4x32x256xbf16, #tpu.memory_space<vmem>>, vector<1x1x32x256xbf16>
    %8 = vector.shape_cast %7 : vector<1x1x32x256xbf16> to vector<32x256xbf16>
    %cst_12 = arith.constant dense<0.000000e+00> : vector<8x256xf32>
    %9 = tpu.matmul %6, %8, %cst_12 {dimension_numbers = #tpu.dot_dimension_numbers<[1], [0], [0], [1], [0, 0, 1, 1], [], []>} : vector<8x32xbf16>, vector<32x256xbf16>, vector<8x256xf32> -> vector<8x256xf32>
    %c2 = arith.constant 2 : index
    %c0_13 = arith.constant 0 : index
    %c0_14 = arith.constant 0 : index
    %10 = vector.load %arg2[%c2, %c0_13, %c0_14] : memref<4x8x32xbf16, #tpu.memory_space<vmem>>, vector<1x8x32xbf16>
    %11 = vector.shape_cast %10 : vector<1x8x32xbf16> to vector<8x32xbf16>
    %c0_15 = arith.constant 0 : index
    %c2_16 = arith.constant 2 : index
    %c0_17 = arith.constant 0 : index
    %c0_18 = arith.constant 0 : index
    %12 = vector.load %arg1[%c0_15, %c2_16, %c0_17, %c0_18] : memref<1x4x32x256xbf16, #tpu.memory_space<vmem>>, vector<1x1x32x256xbf16>
    %13 = vector.shape_cast %12 : vector<1x1x32x256xbf16> to vector<32x256xbf16>
    %cst_19 = arith.constant dense<0.000000e+00> : vector<8x256xf32>
    %14 = tpu.matmul %11, %13, %cst_19 {dimension_numbers = #tpu.dot_dimension_numbers<[1], [0], [0], [1], [0, 0, 1, 1], [], []>} : vector<8x32xbf16>, vector<32x256xbf16>, vector<8x256xf32> -> vector<8x256xf32>
    %c3 = arith.constant 3 : index
    %c0_20 = arith.constant 0 : index
    %c0_21 = arith.constant 0 : index
    %15 = vector.load %arg2[%c3, %c0_20, %c0_21] : memref<4x8x32xbf16, #tpu.memory_space<vmem>>, vector<1x8x32xbf16>
    %16 = vector.shape_cast %15 : vector<1x8x32xbf16> to vector<8x32xbf16>
    %c0_22 = arith.constant 0 : index
    %c3_23 = arith.constant 3 : index
    %c0_24 = arith.constant 0 : index
    %c0_25 = arith.constant 0 : index
    %17 = vector.load %arg1[%c0_22, %c3_23, %c0_24, %c0_25] : memref<1x4x32x256xbf16, #tpu.memory_space<vmem>>, vector<1x1x32x256xbf16>
    %18 = vector.shape_cast %17 : vector<1x1x32x256xbf16> to vector<32x256xbf16>
    %cst_26 = arith.constant dense<0.000000e+00> : vector<8x256xf32>
    %19 = tpu.matmul %16, %18, %cst_26 {dimension_numbers = #tpu.dot_dimension_numbers<[1], [0], [0], [1], [0, 0, 1, 1], [], []>} : vector<8x32xbf16>, vector<32x256xbf16>, vector<8x256xf32> -> vector<8x256xf32>
    %c0_27 = arith.constant 0 : index
    %c0_28 = arith.constant 0 : index
    %c0_29 = arith.constant 0 : index
    %c0_30 = arith.constant 0 : index
    %20 = vector.load %arg3[%c0_27, %c0_28, %c0_29, %c0_30] : memref<1x4x8x256xf32, #tpu.memory_space<vmem>>, vector<1x1x8x256xf32>
    %21 = vector.shape_cast %20 : vector<1x1x8x256xf32> to vector<8x256xf32>
    %22 = vector.shape_cast %4 : vector<8x256xf32> to vector<1x1x8x256xf32>
    tpu.vector_store %arg3[%c0_27, %c0_28, %c0_29, %c0_30], %22 {strides = array<i32>} : memref<1x4x8x256xf32, #tpu.memory_space<vmem>>, vector<1x1x8x256xf32>,
    %c0_31 = arith.constant 0 : index
    %c1_32 = arith.constant 1 : index
    %c0_33 = arith.constant 0 : index
    %c0_34 = arith.constant 0 : index
    %23 = vector.load %arg3[%c0_31, %c1_32, %c0_33, %c0_34] : memref<1x4x8x256xf32, #tpu.memory_space<vmem>>, vector<1x1x8x256xf32>
    %24 = vector.shape_cast %23 : vector<1x1x8x256xf32> to vector<8x256xf32>
    %25 = vector.shape_cast %9 : vector<8x256xf32> to vector<1x1x8x256xf32>
    tpu.vector_store %arg3[%c0_31, %c1_32, %c0_33, %c0_34], %25 {strides = array<i32>} : memref<1x4x8x256xf32, #tpu.memory_space<vmem>>, vector<1x1x8x256xf32>,
    %c0_35 = arith.constant 0 : index
    %c2_36 = arith.constant 2 : index
    %c0_37 = arith.constant 0 : index
    %c0_38 = arith.constant 0 : index
    %26 = vector.load %arg3[%c0_35, %c2_36, %c0_37, %c0_38] : memref<1x4x8x256xf32, #tpu.memory_space<vmem>>, vector<1x1x8x256xf32>
    %27 = vector.shape_cast %26 : vector<1x1x8x256xf32> to vector<8x256xf32>
    %28 = vector.shape_cast %14 : vector<8x256xf32> to vector<1x1x8x256xf32>
    tpu.vector_store %arg3[%c0_35, %c2_36, %c0_37, %c0_38], %28 {strides = array<i32>} : memref<1x4x8x256xf32, #tpu.memory_space<vmem>>, vector<1x1x8x256xf32>,
    %c0_39 = arith.constant 0 : index
    %c3_40 = arith.constant 3 : index
    %c0_41 = arith.constant 0 : index
    %c0_42 = arith.constant 0 : index
    %29 = vector.load %arg3[%c0_39, %c3_40, %c0_41, %c0_42] : memref<1x4x8x256xf32, #tpu.memory_space<vmem>>, vector<1x1x8x256xf32>
    %30 = vector.shape_cast %29 : vector<1x1x8x256xf32> to vector<8x256xf32>
    %31 = vector.shape_cast %19 : vector<8x256xf32> to vector<1x1x8x256xf32>
    tpu.vector_store %arg3[%c0_39, %c3_40, %c0_41, %c0_42], %31 {strides = array<i32>} : memref<1x4x8x256xf32, #tpu.memory_space<vmem>>, vector<1x1x8x256xf32>,
    return
  }
  func.func @transform_0(%arg0: i32) -> (i32, i32, i32, i32) {
    %c0_i32 = arith.constant 0 : i32
    %c0_i32_0 = arith.constant 0 : i32
    %c0_i32_1 = arith.constant 0 : i32
    %c0_i32_2 = arith.constant 0 : i32
    return %arg0, %c0_i32, %c0_i32_0, %c0_i32_1 : i32, i32, i32, i32
  }
  func.func @transform_1(%arg0: i32) -> (i32, i32, i32) {
    %c0_i32 = arith.constant 0 : i32
    %c0_i32_0 = arith.constant 0 : i32
    %c0_i32_1 = arith.constant 0 : i32
    %c0_i32_2 = arith.constant 0 : i32
    return %c0_i32, %c0_i32_0, %c0_i32_1 : i32, i32, i32
  }
  func.func @transform_2(%arg0: i32) -> (i32, i32, i32, i32) {
    %c0_i32 = arith.constant 0 : i32
    %c0_i32_0 = arith.constant 0 : i32
    %c0_i32_1 = arith.constant 0 : i32
    %c0_i32_2 = arith.constant 0 : i32
    return %arg0, %c0_i32, %c0_i32_0, %c0_i32_1 : i32, i32, i32, i32
  }
}

</mosaic_0001>

<llo_original>
// kernel: a_call__.4
$region0: #{a_call__.4}
  #allocation0 [shape = 'u32[]', space=smem, size = 0x4, offset = 0x4, fixed_abs, tag = 'smem constant byte address 0x4 - core index']
  #allocation1 [shape = 'u32[72,128]{1,0:T(1,128)}', space=vmem, size = 0x9000, scoped, tag = 'internal scratch']
  %s0 = inlined_call_operand.vmem [shape: bf16[2,1,256,16], index: 0, kind: input, shape index: {}]
  %s1 = inlined_call_operand.vmem [shape: bf16[1,32,256], index: 1, kind: input, shape index: {}]
  %s2 = inlined_call_operand.vmem [shape: bf16[2,1,32,16], index: 2, kind: output, shape index: {}]
  %s3 = sld [smem:[#allocation0]]
  $region41: #{a_call__.4} parent=0
    _
  %s5 = ssub.s32 1, %s3
  %s6 = scalar_select 0, %s5, %s3
  loop: start=0, step=1, limit=4
  $region2: #{a_call__.4} parent=0 // loop_pre_header
    _
  $region3: #{a_call__.4} parent=0 // loop_header
    %s8 = sphi 0, %s12
    %p9 = scmp.ge.s32.totalorder %s8, 4
    %s18 = sphi 0, %s20
    %s21 = sphi 0, %s18
    %s22 = sphi 0, %s21
    %s38 = sphi 0, %s22
    %s42 = sphi 0, %s42
    %s44 = sphi 0, %s42
    %s45 = sphi 0, %s44
    %s59 = sphi 0, %s45
    %s65 = sphi 0, %s67
    %s68 = sphi 0, %s65
    %s69 = sphi 0, %s68
    %s85 = sphi 0, %s69
  $region4: #{a_call__.4} parent=0 // loop_header_branch
    %11 = sbr.rel (%p9) target = $region8
  $region5: #{a_call__.4} parent=0 // loop_body
    %s13 = ssub.s32 %s8, 1
    %s14 = ssub.s32 %s8, 2
    %s15 = sadd.s32 %s8, 1
    %s16 = ssub.s32 %s8, %s15
    %p17 = scmp.eq.s32.totalorder %s16, 0
    %s19 = sadd.s32 %s18, 1
    %s20 = scalar_select %p17, %s18, %s19
    %p23 = pneg %p17
    %p24 = scmp.eq.s32.totalorder %s8, 1
    %p25 = por %p23, %p24
    %p26 = scmp.ne.s32.totalorder %s18, %s21
    %p27 = scmp.eq.s32.totalorder %s8, 0
    %p28 = por %p26, %p27
    %p29 = scmp.ne.s32.totalorder %s18, %s21
    %p30 = scmp.eq.s32.totalorder %s13, 1
    %p31 = por %p29, %p30
    %p32 = scmp.ne.s32.totalorder %s21, %s22
    %p33 = scmp.eq.s32.totalorder %s13, 0
    %p34 = por %p32, %p33
    %p35 = scmp.ne.s32.totalorder %s21, %s22
    %p36 = scmp.eq.s32.totalorder %s14, 1
    %p37 = por %p35, %p36
    %p39 = scmp.ne.s32.totalorder %s22, %s38
    %p40 = scmp.eq.s32.totalorder %s14, 0
    %p41 = por %p39, %p40
    %s43 = sadd.s32 %s42, 1
    %p46 = scmp.eq.s32.totalorder %s8, 1
    %p47 = scmp.ne.s32.totalorder %s42, %s44
    %p48 = scmp.eq.s32.totalorder %s8, 0
    %p49 = por %p47, %p48
    %p50 = scmp.ne.s32.totalorder %s42, %s44
    %p51 = scmp.eq.s32.totalorder %s13, 1
    %p52 = por %p50, %p51
    %p53 = scmp.ne.s32.totalorder %s44, %s45
    %p54 = scmp.eq.s32.totalorder %s13, 0
    %p55 = por %p53, %p54
    %p56 = scmp.ne.s32.totalorder %s44, %s45
    %p57 = scmp.eq.s32.totalorder %s14, 1
    %p58 = por %p56, %p57
    %p60 = scmp.ne.s32.totalorder %s45, %s59
    %p61 = scmp.eq.s32.totalorder %s14, 0
    %p62 = por %p60, %p61
    %s63 = ssub.s32 %s8, %s15
    %p64 = scmp.eq.s32.totalorder %s63, 0
    %s66 = sadd.s32 %s65, 1
    %s67 = scalar_select %p64, %s65, %s66
    %p70 = pneg %p64
    %p71 = scmp.eq.s32.totalorder %s8, 1
    %p72 = por %p70, %p71
    %p73 = scmp.ne.s32.totalorder %s65, %s68
    %p74 = scmp.eq.s32.totalorder %s8, 0
    %p75 = por %p73, %p74
    %p76 = scmp.ne.s32.totalorder %s65, %s68
    %p77 = scmp.eq.s32.totalorder %s13, 1
    %p78 = por %p76, %p77
    %p79 = scmp.ne.s32.totalorder %s68, %s69
    %p80 = scmp.eq.s32.totalorder %s13, 0
    %p81 = por %p79, %p80
    %p82 = scmp.ne.s32.totalorder %s68, %s69
    %p83 = scmp.eq.s32.totalorder %s14, 1
    %p84 = por %p82, %p83
    %p86 = scmp.ne.s32.totalorder %s69, %s85
    %p87 = scmp.eq.s32.totalorder %s14, 0
    %p88 = por %p86, %p87
    %p89 = scmp.le.s32.totalorder 1, %s8
    %p90 = scmp.lt.s32.totalorder %s8, 3
    %p91 = pnand %p89, %p90
    %p92 = pneg %p91
    // Predicated region
    $region9: #{a_call__.4} parent=5 // pred_check
      _
    $region10: #{a_call__.4} parent=5 // pred_check_branch
      %94 = sbr.rel (%p91) target = $region12
    $region11: #{a_call__.4} parent=5 // pred_region
      %s95 = ssub.s32 %s8, 1
      // Predicated region
      $region13: #{a_call__.4} parent=11 // pred_check
        %p96 = pneg %p55
      $region14: #{a_call__.4} parent=11 // pred_check_branch
        %98 = sbr.rel (%p96) target = $region16
      $region15: #{a_call__.4} parent=11 // pred_region
        _
      $region16: #{a_call__.4} parent=11 // pred_fallthru
        _
    $region12: #{a_call__.4} parent=5 // pred_fallthru
      _
    %p99 = scmp.lt.s32.totalorder %s8, 2
    // Predicated region
    $region17: #{a_call__.4} parent=5 // pred_check
      %p100 = pneg %p99
    $region18: #{a_call__.4} parent=5 // pred_check_branch
      %102 = sbr.rel (%p100) target = $region20
    $region19: #{a_call__.4} parent=5 // pred_region
      // Predicated region
      $region21: #{a_call__.4} parent=19 // pred_check
        %p103 = pneg %p28
      $region22: #{a_call__.4} parent=19 // pred_check_branch
        %105 = sbr.rel (%p103) target = $region24
      $region23: #{a_call__.4} parent=19 // pred_region
        %p106 = scmp.lt.s32.totalorder %s8, 1
        %s107 = scalar_select %p106, %s8, 1
        %s108 = smul.addr %s107, 32
        %s109 = smul.addr %s108, 4
        %s110 = scalar_lea.vmem %s0, %s109
      $region24: #{a_call__.4} parent=19 // pred_fallthru
        _
    $region20: #{a_call__.4} parent=5 // pred_fallthru
      _
    %p111 = scmp.le.s32.totalorder 1, %s8
    %p112 = scmp.lt.s32.totalorder %s8, 3
    %p113 = pnand %p111, %p112
    %p114 = pneg %p113
    // Predicated region
    $region25: #{a_call__.4} parent=5 // pred_check
      _
    $region26: #{a_call__.4} parent=5 // pred_check_branch
      %116 = sbr.rel (%p113) target = $region28
    $region27: #{a_call__.4} parent=5 // pred_region
      %s117 = ssub.s32 %s8, 1
      %p118 = scmp.lt.s32.totalorder %s13, 1
      %s119 = scalar_select %p118, %s13, 1
      %s120 = smul.addr %s119, 32
      %s121 = smul.addr %s120, 4
      %s122 = scalar_lea.vmem %s0, %s121
      %p123 = pneg %p34
      %p124 = pneg %p31
      %p125 = pneg %p55
      %p126 = pneg %p52
      %p127 = pneg %p81
      %p128 = pneg %p78
      %p129 = scmp.lt.s32.totalorder %s13, 1
      %s130 = scalar_select %p129, %s13, 1
      %s131 = smul.addr %s130, 4
      %s132 = smul.addr %s131, 4
      %s133 = scalar_lea.vmem %s2, %s132
      %p134 = scmp.lt.s32.totalorder %s13, 1
      %s135 = scalar_select %p134, %s13, 1
      %s136 = smul.addr %s135, 32
      %s137 = smul.addr %s136, 4
      %s138 = scalar_lea.vmem %s0, %s137
      %p139 = scmp.lt.s32.totalorder %s13, 1
      %s140 = scalar_select %p139, %s13, 1
      %s141 = smul.addr %s140, 4
      %s142 = smul.addr %s141, 4
      %s143 = scalar_lea.vmem %s2, %s142
      %v144 = vld [vmem:[%s1] sm:$0xff]
      %v145 = vld [vmem:[%s1 + $0x8] sm:$0xff]
      %v146 = vld [vmem:[%s1 + $0x10] sm:$0xff]
      %v147 = vld [vmem:[%s1 + $0x18] sm:$0xff]
      %v148 = vld [vmem:[%s138] sm:$0xf]
      %v149 = vld [vmem:[%s138 + $0x4] sm:$0xf]
      %v150 = vld [vmem:[%s138 + $0x8] sm:$0xf]
      %v151 = vld [vmem:[%s138 + $0xc] sm:$0xf]
      %v152 = vld [vmem:[%s138 + $0x10] sm:$0xf]
      %v153 = vld [vmem:[%s138 + $0x14] sm:$0xf]
      %v154 = vld [vmem:[%s138 + $0x18] sm:$0xf]
      %v155 = vld [vmem:[%s138 + $0x1c] sm:$0xf]
      %v156 = vld [vmem:[%s138 + $0x20] sm:$0xf]
      %v157 = vld [vmem:[%s138 + $0x24] sm:$0xf]
      %v158 = vld [vmem:[%s138 + $0x28] sm:$0xf]
      %v159 = vld [vmem:[%s138 + $0x2c] sm:$0xf]
      %v160 = vld [vmem:[%s138 + $0x30] sm:$0xf]
      %v161 = vld [vmem:[%s138 + $0x34] sm:$0xf]
      %v162 = vld [vmem:[%s138 + $0x38] sm:$0xf]
      %v163 = vld [vmem:[%s138 + $0x3c] sm:$0xf]
      %v164 = vld [vmem:[%s138 + $0x40] sm:$0xf]
      %v165 = vld [vmem:[%s138 + $0x44] sm:$0xf]
      %v166 = vld [vmem:[%s138 + $0x48] sm:$0xf]
      %v167 = vld [vmem:[%s138 + $0x4c] sm:$0xf]
      %v168 = vld [vmem:[%s138 + $0x50] sm:$0xf]
      %v169 = vld [vmem:[%s138 + $0x54] sm:$0xf]
      %v170 = vld [vmem:[%s138 + $0x58] sm:$0xf]
      %v171 = vld [vmem:[%s138 + $0x5c] sm:$0xf]
      %v172 = vld [vmem:[%s138 + $0x60] sm:$0xf]
      %v173 = vld [vmem:[%s138 + $0x64] sm:$0xf]
      %v174 = vld [vmem:[%s138 + $0x68] sm:$0xf]
      %v175 = vld [vmem:[%s138 + $0x6c] sm:$0xf]
      %v176 = vld [vmem:[%s138 + $0x70] sm:$0xf]
      %v177 = vld [vmem:[%s138 + $0x74] sm:$0xf]
      %v178 = vld [vmem:[%s138 + $0x78] sm:$0xf]
      %v179 = vld [vmem:[%s138 + $0x7c] sm:$0xf]
      %v184 = vunpack.c.l.b16 %v144
      %v185 = vunpack.c.h.b16 %v144
      %v186 = vunpack.c.l.b16 %v145
      %v187 = vunpack.c.h.b16 %v145
      %v188 = vunpack.c.l.b16 %v146
      %v189 = vunpack.c.h.b16 %v146
      %v190 = vunpack.c.l.b16 %v147
      %v191 = vunpack.c.h.b16 %v147
      %v192 = vpack.c.b16 %v186, %v184
      %v193 = vpack.c.b16 %v187, %v185
      %v194 = vpack.c.b16 %v190, %v188
      %v195 = vpack.c.b16 %v191, %v189
      %v232 = vunpack.c.l.b16 %v148
      %v233 = vunpack.c.l.b16 %v149
      %v234 = vunpack.c.l.b16 %v150
      %v235 = vunpack.c.l.b16 %v151
      %v236 = vunpack.c.l.b16 %v152
      %v237 = vunpack.c.l.b16 %v153
      %v238 = vunpack.c.l.b16 %v154
      %v239 = vunpack.c.l.b16 %v155
      %v240 = vunpack.c.l.b16 %v156
      %v241 = vunpack.c.l.b16 %v157
      %v242 = vunpack.c.l.b16 %v158
      %v243 = vunpack.c.l.b16 %v159
      %v244 = vunpack.c.l.b16 %v160
      %v245 = vunpack.c.l.b16 %v161
      %v246 = vunpack.c.l.b16 %v162
      %v247 = vunpack.c.l.b16 %v163
      %v248 = vunpack.c.l.b16 %v164
      %v249 = vunpack.c.l.b16 %v165
      %v250 = vunpack.c.l.b16 %v166
      %v251 = vunpack.c.l.b16 %v167
      %v252 = vunpack.c.l.b16 %v168
      %v253 = vunpack.c.l.b16 %v169
      %v254 = vunpack.c.l.b16 %v170
      %v255 = vunpack.c.l.b16 %v171
      %v256 = vunpack.c.l.b16 %v172
      %v257 = vunpack.c.l.b16 %v173
      %v258 = vunpack.c.l.b16 %v174
      %v259 = vunpack.c.l.b16 %v175
      %v260 = vunpack.c.l.b16 %v176
      %v261 = vunpack.c.l.b16 %v177
      %v262 = vunpack.c.l.b16 %v178
      %v263 = vunpack.c.l.b16 %v179
      %v264 = vpack.c.b16 %v233, %v232
      %v265 = vpack.c.b16 %v235, %v234
      %v266 = vpack.c.b16 %v237, %v236
      %v267 = vpack.c.b16 %v239, %v238
      %v268 = vpack.c.b16 %v241, %v240
      %v269 = vpack.c.b16 %v243, %v242
      %v270 = vpack.c.b16 %v245, %v244
      %v271 = vpack.c.b16 %v247, %v246
      %v272 = vpack.c.b16 %v249, %v248
      %v273 = vpack.c.b16 %v251, %v250
      %v274 = vpack.c.b16 %v253, %v252
      %v275 = vpack.c.b16 %v255, %v254
      %v276 = vpack.c.b16 %v257, %v256
      %v277 = vpack.c.b16 %v259, %v258
      %v278 = vpack.c.b16 %v261, %v260
      %v279 = vpack.c.b16 %v263, %v262
      %296 = vmatpush.bf16.msra.mxu0 %v271
      %297 = vmatpush.bf16.msra.mxu0 %v270
      %298 = vmatpush.bf16.msra.mxu0 %v269
      %299 = vmatpush.bf16.msra.mxu0 %v268
      %300 = vmatpush.bf16.msra.mxu0 %v267
      %301 = vmatpush.bf16.msra.mxu0 %v266
      %302 = vmatpush.bf16.msra.mxu0 %v265
      %303 = vmatpush.bf16.msra.mxu0 %v264
      %304 = vmatmul.bf16.gmra.mxu0 %v192
      %v305 = vpop.f32.mrf.mxu0
      %v306 = vadd.f32 0.0, %v305
      %v307 = vpop.f32.mrf.mxu0
      %v308 = vadd.f32 0.0, %v307
      %309 = vmatmul.bf16.gmra.mxu0 %v194
      %v310 = vpop.f32.mrf.mxu0
      %v311 = vadd.f32 0.0, %v310
      %v312 = vpop.f32.mrf.mxu0
      %v313 = vadd.f32 0.0, %v312
      %314 = vdwg.mxu0
      %315 = vmatpush.bf16.msra.mxu0 %v279
      %316 = vmatpush.bf16.msra.mxu0 %v278
      %317 = vmatpush.bf16.msra.mxu0 %v277
      %318 = vmatpush.bf16.msra.mxu0 %v276
      %319 = vmatpush.bf16.msra.mxu0 %v275
      %320 = vmatpush.bf16.msra.mxu0 %v274
      %321 = vmatpush.bf16.msra.mxu0 %v273
      %322 = vmatpush.bf16.msra.mxu0 %v272
      %323 = vmatmul.bf16.gmra.mxu0 %v193
      %v324 = vpop.f32.mrf.mxu0
      %v325 = vadd.f32 %v306, %v324
      %v326 = vpop.f32.mrf.mxu0
      %v327 = vadd.f32 %v308, %v326
      %328 = vmatmul.bf16.gmra.mxu0 %v195
      %v329 = vpop.f32.mrf.mxu0
      %v330 = vadd.f32 %v311, %v329
      %v331 = vpop.f32.mrf.mxu0
      %v332 = vadd.f32 %v313, %v331
      %333 = vdwg.mxu0
      %vm334 = vcmask 130048
      %v335 = vsel %vm334, %v325, 0.0
      %336 = vadd.xlane.f32.xlu0 %v335
      %v337 = vpop.xlane.xlu0 %336
      %v338 = vsel %vm334, %v327, 0.0
      %339 = vadd.xlane.f32.xlu0 %v338
      %v340 = vpop.xlane.xlu0 %339
      %v341 = vsel %vm334, %v330, 0.0
      %342 = vadd.xlane.f32.xlu0 %v341
      %v343 = vpop.xlane.xlu0 %342
      %v344 = vsel %vm334, %v332, 0.0
      %345 = vadd.xlane.f32.xlu0 %v344
      %v346 = vpop.xlane.xlu0 %345
      %v347 = vmul.f32 %v337, 0.0625
      %v348 = vmul.f32 %v340, 0.0625
      %v349 = vmul.f32 %v343, 0.0625
      %v350 = vmul.f32 %v346, 0.0625
      %v351 = vsub.f32 %v325, %v347
      %v352 = vsub.f32 %v327, %v348
      %v353 = vsub.f32 %v330, %v349
      %v354 = vsub.f32 %v332, %v350
      %v355 = vmul.f32 %v351, %v351
      %v356 = vmul.f32 %v352, %v352
      %v357 = vmul.f32 %v353, %v353
      %v358 = vmul.f32 %v354, %v354
      %v359 = vsel %vm334, %v355, 0.0
      %360 = vadd.xlane.f32.xlu0 %v359
      %v361 = vpop.xlane.xlu0 %360
      %v362 = vsel %vm334, %v356, 0.0
      %363 = vadd.xlane.f32.xlu0 %v362
      %v364 = vpop.xlane.xlu0 %363
      %v365 = vsel %vm334, %v357, 0.0
      %366 = vadd.xlane.f32.xlu0 %v365
      %v367 = vpop.xlane.xlu0 %366
      %v368 = vsel %vm334, %v358, 0.0
      %369 = vadd.xlane.f32.xlu0 %v368
      %v370 = vpop.xlane.xlu0 %369
      %v371 = vmul.f32 %v361, 0.0625
      %v372 = vmul.f32 %v364, 0.0625
      %v373 = vmul.f32 %v367, 0.0625
      %v374 = vmul.f32 %v370, 0.0625
      %v375 = vadd.f32 %v371, 1e-05
      %v376 = vadd.f32 %v372, 1e-05
      %v377 = vadd.f32 %v373, 1e-05
      %v378 = vadd.f32 %v374, 1e-05
      %v379 = vrsqrt.pop %v375
      %v380 = vmul.f32 %v379, %v375
      %v381 = vmul.f32 %v380, %v379
      %v382 = vmul.f32 0.5, %v381
      %v383 = vsub.f32 1.5, %v382
      %v384 = vmul.f32 %v379, %v383
      %vm385 = vweird.f32 %v375
      %vm386 = vweird.f32 %v379
      %vm387 = vmor %vm385, %vm386
      %v388 = vsel %vm387, %v379, %v384
      %v389 = vrsqrt.pop %v376
      %v390 = vmul.f32 %v389, %v376
      %v391 = vmul.f32 %v390, %v389
      %v392 = vmul.f32 0.5, %v391
      %v393 = vsub.f32 1.5, %v392
      %v394 = vmul.f32 %v389, %v393
      %vm395 = vweird.f32 %v376
      %vm396 = vweird.f32 %v389
      %vm397 = vmor %vm395, %vm396
      %v398 = vsel %vm397, %v389, %v394
      %v399 = vrsqrt.pop %v377
      %v400 = vmul.f32 %v399, %v377
      %v401 = vmul.f32 %v400, %v399
      %v402 = vmul.f32 0.5, %v401
      %v403 = vsub.f32 1.5, %v402
      %v404 = vmul.f32 %v399, %v403
      %vm405 = vweird.f32 %v377
      %vm406 = vweird.f32 %v399
      %vm407 = vmor %vm405, %vm406
      %v408 = vsel %vm407, %v399, %v404
      %v409 = vrsqrt.pop %v378
      %v410 = vmul.f32 %v409, %v378
      %v411 = vmul.f32 %v410, %v409
      %v412 = vmul.f32 0.5, %v411
      %v413 = vsub.f32 1.5, %v412
      %v414 = vmul.f32 %v409, %v413
      %vm415 = vweird.f32 %v378
      %vm416 = vweird.f32 %v409
      %vm417 = vmor %vm415, %vm416
      %v418 = vsel %vm417, %v409, %v414
      %v419 = vmul.f32 %v351, %v388
      %v420 = vmul.f32 %v352, %v398
      %v421 = vmul.f32 %v353, %v408
      %v422 = vmul.f32 %v354, %v418
      %v423 = vmul.f32 %v419, 0.01
      %v424 = vmul.f32 %v420, 0.01
      %v425 = vmul.f32 %v421, 0.01
      %v426 = vmul.f32 %v422, 0.01
      %v427 = vmax.f32 %v419, %v423
      %v428 = vmax.f32 %v420, %v424
      %v429 = vmax.f32 %v421, %v425
      %v430 = vmax.f32 %v422, %v426
      %v431 = vpack.c.bf16 %v427, %v427
      %v432 = vpack.c.bf16 %v428, %v428
      %v433 = vpack.c.bf16 %v429, %v429
      %v434 = vpack.c.bf16 %v430, %v430
      %vm435 = vcmask 125952
      %436 = vst.msk [vmem:[%s143] sm:$0xf] %vm435, %v431
      %437 = vst.msk [vmem:[%s143 + $0x4] sm:$0xf] %vm435, %v432
      %438 = vst.msk [vmem:[%s143 + $0x8] sm:$0xf] %vm435, %v433
      %439 = vst.msk [vmem:[%s143 + $0xc] sm:$0xf] %vm435, %v434
      %p440 = scmp.lt.s32.totalorder %s13, 1
      %s441 = scalar_select %p440, %s13, 1
      %s442 = smul.addr %s441, 4
      %s443 = smul.addr %s442, 4
      %s444 = scalar_lea.vmem %s2, %s443
      // Predicated region
      $region29: #{a_call__.4} parent=27 // pred_check
        %p445 = pneg %p78
      $region30: #{a_call__.4} parent=27 // pred_check_branch
        %447 = sbr.rel (%p445) target = $region32
      $region31: #{a_call__.4} parent=27 // pred_region
        _
      $region32: #{a_call__.4} parent=27 // pred_fallthru
        _
    $region28: #{a_call__.4} parent=5 // pred_fallthru
      _
    %p448 = scmp.le.s32.totalorder 2, %s8
    // Predicated region
    $region33: #{a_call__.4} parent=5 // pred_check
      %p449 = pneg %p448
    $region34: #{a_call__.4} parent=5 // pred_check_branch
      %451 = sbr.rel (%p449) target = $region36
    $region35: #{a_call__.4} parent=5 // pred_region
      %s452 = ssub.s32 %s8, 2
      // Predicated region
      $region37: #{a_call__.4} parent=35 // pred_check
        %p453 = pneg %p84
      $region38: #{a_call__.4} parent=35 // pred_check_branch
        %455 = sbr.rel (%p453) target = $region40
      $region39: #{a_call__.4} parent=35 // pred_region
        %p456 = scmp.lt.s32.totalorder %s14, 1
        %s457 = scalar_select %p456, %s14, 1
        %s458 = smul.addr %s457, 4
        %s459 = smul.addr %s458, 4
        %s460 = scalar_lea.vmem %s2, %s459
      $region40: #{a_call__.4} parent=35 // pred_fallthru
        _
    $region36: #{a_call__.4} parent=5 // pred_fallthru
      _
  $region6: #{a_call__.4} parent=0 // loop_footer
    %s12 = sadd.s32 1, %s8
  $region7: #{a_call__.4} parent=0 // loop_footer_branch
    %7 = sbr.rel target = $region3
  $region8: #{a_call__.4} parent=0 // loop_exit
    _

// kernel: a_call__.5
$region0: #{a_call__.5}
  #allocation0 [shape = 'u32[]', space=smem, size = 0x4, offset = 0x4, fixed_abs, tag = 'smem constant byte address 0x4 - core index']
  #allocation1 [shape = 'u32[72,128]{1,0:T(1,128)}', space=vmem, size = 0x9000, scoped, tag = 'internal scratch']
  %s0 = inlined_call_operand.vmem [shape: bf16[2,4,128,16], index: 0, kind: input, shape index: {}]
  %s1 = inlined_call_operand.vmem [shape: bf16[4,16,128], index: 1, kind: input, shape index: {}]
  %s2 = inlined_call_operand.vmem [shape: bf16[2,4,16,16], index: 2, kind: output, shape index: {}]
  %s3 = sld [smem:[#allocation0]]
  $region41: #{a_call__.5} parent=0
    _
  %s5 = ssub.s32 1, %s3
  %s6 = scalar_select 0, %s5, %s3
  loop: start=0, step=1, limit=4
  $region2: #{a_call__.5} parent=0 // loop_pre_header
    _
  $region3: #{a_call__.5} parent=0 // loop_header
    %s8 = sphi 0, %s12
    %p9 = scmp.ge.s32.totalorder %s8, 4
    %s18 = sphi 0, %s20
    %s21 = sphi 0, %s18
    %s22 = sphi 0, %s21
    %s38 = sphi 0, %s22
    %s42 = sphi 0, %s42
    %s44 = sphi 0, %s42
    %s45 = sphi 0, %s44
    %s59 = sphi 0, %s45
    %s65 = sphi 0, %s67
    %s68 = sphi 0, %s65
    %s69 = sphi 0, %s68
    %s85 = sphi 0, %s69
  $region4: #{a_call__.5} parent=0 // loop_header_branch
    %11 = sbr.rel (%p9) target = $region8
  $region5: #{a_call__.5} parent=0 // loop_body
    %s13 = ssub.s32 %s8, 1
    %s14 = ssub.s32 %s8, 2
    %s15 = sadd.s32 %s8, 1
    %s16 = ssub.s32 %s8, %s15
    %p17 = scmp.eq.s32.totalorder %s16, 0
    %s19 = sadd.s32 %s18, 1
    %s20 = scalar_select %p17, %s18, %s19
    %p23 = pneg %p17
    %p24 = scmp.eq.s32.totalorder %s8, 1
    %p25 = por %p23, %p24
    %p26 = scmp.ne.s32.totalorder %s18, %s21
    %p27 = scmp.eq.s32.totalorder %s8, 0
    %p28 = por %p26, %p27
    %p29 = scmp.ne.s32.totalorder %s18, %s21
    %p30 = scmp.eq.s32.totalorder %s13, 1
    %p31 = por %p29, %p30
    %p32 = scmp.ne.s32.totalorder %s21, %s22
    %p33 = scmp.eq.s32.totalorder %s13, 0
    %p34 = por %p32, %p33
    %p35 = scmp.ne.s32.totalorder %s21, %s22
    %p36 = scmp.eq.s32.totalorder %s14, 1
    %p37 = por %p35, %p36
    %p39 = scmp.ne.s32.totalorder %s22, %s38
    %p40 = scmp.eq.s32.totalorder %s14, 0
    %p41 = por %p39, %p40
    %s43 = sadd.s32 %s42, 1
    %p46 = scmp.eq.s32.totalorder %s8, 1
    %p47 = scmp.ne.s32.totalorder %s42, %s44
    %p48 = scmp.eq.s32.totalorder %s8, 0
    %p49 = por %p47, %p48
    %p50 = scmp.ne.s32.totalorder %s42, %s44
    %p51 = scmp.eq.s32.totalorder %s13, 1
    %p52 = por %p50, %p51
    %p53 = scmp.ne.s32.totalorder %s44, %s45
    %p54 = scmp.eq.s32.totalorder %s13, 0
    %p55 = por %p53, %p54
    %p56 = scmp.ne.s32.totalorder %s44, %s45
    %p57 = scmp.eq.s32.totalorder %s14, 1
    %p58 = por %p56, %p57
    %p60 = scmp.ne.s32.totalorder %s45, %s59
    %p61 = scmp.eq.s32.totalorder %s14, 0
    %p62 = por %p60, %p61
    %s63 = ssub.s32 %s8, %s15
    %p64 = scmp.eq.s32.totalorder %s63, 0
    %s66 = sadd.s32 %s65, 1
    %s67 = scalar_select %p64, %s65, %s66
    %p70 = pneg %p64
    %p71 = scmp.eq.s32.totalorder %s8, 1
    %p72 = por %p70, %p71
    %p73 = scmp.ne.s32.totalorder %s65, %s68
    %p74 = scmp.eq.s32.totalorder %s8, 0
    %p75 = por %p73, %p74
    %p76 = scmp.ne.s32.totalorder %s65, %s68
    %p77 = scmp.eq.s32.totalorder %s13, 1
    %p78 = por %p76, %p77
    %p79 = scmp.ne.s32.totalorder %s68, %s69
    %p80 = scmp.eq.s32.totalorder %s13, 0
    %p81 = por %p79, %p80
    %p82 = scmp.ne.s32.totalorder %s68, %s69
    %p83 = scmp.eq.s32.totalorder %s14, 1
    %p84 = por %p82, %p83
    %p86 = scmp.ne.s32.totalorder %s69, %s85
    %p87 = scmp.eq.s32.totalorder %s14, 0
    %p88 = por %p86, %p87
    %p89 = scmp.le.s32.totalorder 1, %s8
    %p90 = scmp.lt.s32.totalorder %s8, 3
    %p91 = pnand %p89, %p90
    %p92 = pneg %p91
    // Predicated region
    $region9: #{a_call__.5} parent=5 // pred_check
      _
    $region10: #{a_call__.5} parent=5 // pred_check_branch
      %94 = sbr.rel (%p91) target = $region12
    $region11: #{a_call__.5} parent=5 // pred_region
      %s95 = ssub.s32 %s8, 1
      // Predicated region
      $region13: #{a_call__.5} parent=11 // pred_check
        %p96 = pneg %p55
      $region14: #{a_call__.5} parent=11 // pred_check_branch
        %98 = sbr.rel (%p96) target = $region16
      $region15: #{a_call__.5} parent=11 // pred_region
        _
      $region16: #{a_call__.5} parent=11 // pred_fallthru
        _
    $region12: #{a_call__.5} parent=5 // pred_fallthru
      _
    %p99 = scmp.lt.s32.totalorder %s8, 2
    // Predicated region
    $region17: #{a_call__.5} parent=5 // pred_check
      %p100 = pneg %p99
    $region18: #{a_call__.5} parent=5 // pred_check_branch
      %102 = sbr.rel (%p100) target = $region20
    $region19: #{a_call__.5} parent=5 // pred_region
      // Predicated region
      $region21: #{a_call__.5} parent=19 // pred_check
        %p103 = pneg %p28
      $region22: #{a_call__.5} parent=19 // pred_check_branch
        %105 = sbr.rel (%p103) target = $region24
      $region23: #{a_call__.5} parent=19 // pred_region
        %p106 = scmp.lt.s32.totalorder %s8, 1
        %s107 = scalar_select %p106, %s8, 1
        %s108 = smul.addr %s107, 64
        %s109 = smul.addr %s108, 4
        %s110 = scalar_lea.vmem %s0, %s109
      $region24: #{a_call__.5} parent=19 // pred_fallthru
        _
    $region20: #{a_call__.5} parent=5 // pred_fallthru
      _
    %p111 = scmp.le.s32.totalorder 1, %s8
    %p112 = scmp.lt.s32.totalorder %s8, 3
    %p113 = pnand %p111, %p112
    %p114 = pneg %p113
    // Predicated region
    $region25: #{a_call__.5} parent=5 // pred_check
      _
    $region26: #{a_call__.5} parent=5 // pred_check_branch
      %116 = sbr.rel (%p113) target = $region28
    $region27: #{a_call__.5} parent=5 // pred_region
      %s117 = ssub.s32 %s8, 1
      %p118 = scmp.lt.s32.totalorder %s13, 1
      %s119 = scalar_select %p118, %s13, 1
      %s120 = smul.addr %s119, 64
      %s121 = smul.addr %s120, 4
      %s122 = scalar_lea.vmem %s0, %s121
      %p123 = pneg %p34
      %p124 = pneg %p31
      %p125 = pneg %p55
      %p126 = pneg %p52
      %p127 = pneg %p81
      %p128 = pneg %p78
      %p129 = scmp.lt.s32.totalorder %s13, 1
      %s130 = scalar_select %p129, %s13, 1
      %s131 = smul.addr %s130, 8
      %s132 = smul.addr %s131, 4
      %s133 = scalar_lea.vmem %s2, %s132
      %p134 = scmp.lt.s32.totalorder %s13, 1
      %s135 = scalar_select %p134, %s13, 1
      %s136 = smul.addr %s135, 64
      %s137 = smul.addr %s136, 4
      %s138 = scalar_lea.vmem %s0, %s137
      %p139 = scmp.lt.s32.totalorder %s13, 1
      %s140 = scalar_select %p139, %s13, 1
      %s141 = smul.addr %s140, 8
      %s142 = smul.addr %s141, 4
      %s143 = scalar_lea.vmem %s2, %s142
      %v144 = vld [vmem:[%s1] sm:$0xf]
      %v145 = vld [vmem:[%s1 + $0x4] sm:$0xf]
      %v146 = vld [vmem:[%s138] sm:$0xf]
      %v147 = vld [vmem:[%s138 + $0x4] sm:$0xf]
      %v148 = vld [vmem:[%s138 + $0x8] sm:$0xf]
      %v149 = vld [vmem:[%s138 + $0xc] sm:$0xf]
      %v150 = vld [vmem:[%s138 + $0x10] sm:$0xf]
      %v151 = vld [vmem:[%s138 + $0x14] sm:$0xf]
      %v152 = vld [vmem:[%s138 + $0x18] sm:$0xf]
      %v153 = vld [vmem:[%s138 + $0x1c] sm:$0xf]
      %v154 = vld [vmem:[%s138 + $0x20] sm:$0xf]
      %v155 = vld [vmem:[%s138 + $0x24] sm:$0xf]
      %v156 = vld [vmem:[%s138 + $0x28] sm:$0xf]
      %v157 = vld [vmem:[%s138 + $0x2c] sm:$0xf]
      %v158 = vld [vmem:[%s138 + $0x30] sm:$0xf]
      %v159 = vld [vmem:[%s138 + $0x34] sm:$0xf]
      %v160 = vld [vmem:[%s138 + $0x38] sm:$0xf]
      %v161 = vld [vmem:[%s138 + $0x3c] sm:$0xf]
      %v164 = vunpack.c.l.b16 %v144
      %v165 = vunpack.c.l.b16 %v145
      %v166 = vpack.c.b16 %v165, %v164
      %v184 = vunpack.c.l.b16 %v146
      %v185 = vunpack.c.l.b16 %v147
      %v186 = vunpack.c.l.b16 %v148
      %v187 = vunpack.c.l.b16 %v149
      %v188 = vunpack.c.l.b16 %v150
      %v189 = vunpack.c.l.b16 %v151
      %v190 = vunpack.c.l.b16 %v152
      %v191 = vunpack.c.l.b16 %v153
      %v192 = vunpack.c.l.b16 %v154
      %v193 = vunpack.c.l.b16 %v155
      %v194 = vunpack.c.l.b16 %v156
      %v195 = vunpack.c.l.b16 %v157
      %v196 = vunpack.c.l.b16 %v158
      %v197 = vunpack.c.l.b16 %v159
      %v198 = vunpack.c.l.b16 %v160
      %v199 = vunpack.c.l.b16 %v161
      %v200 = vpack.c.b16 %v185, %v184
      %v201 = vpack.c.b16 %v187, %v186
      %v202 = vpack.c.b16 %v189, %v188
      %v203 = vpack.c.b16 %v191, %v190
      %v204 = vpack.c.b16 %v193, %v192
      %v205 = vpack.c.b16 %v195, %v194
      %v206 = vpack.c.b16 %v197, %v196
      %v207 = vpack.c.b16 %v199, %v198
      %216 = vmatpush.bf16.msra.mxu0 %v207
      %217 = vmatpush.bf16.msra.mxu0 %v206
      %218 = vmatpush.bf16.msra.mxu0 %v205
      %219 = vmatpush.bf16.msra.mxu0 %v204
      %220 = vmatpush.bf16.msra.mxu0 %v203
      %221 = vmatpush.bf16.msra.mxu0 %v202
      %222 = vmatpush.bf16.msra.mxu0 %v201
      %223 = vmatpush.bf16.msra.mxu0 %v200
      %224 = vmatmul.bf16.gmra.mxu0 %v166
      %v225 = vpop.f32.mrf.mxu0
      %v226 = vadd.f32 0.0, %v225
      %v227 = vpop.f32.mrf.mxu0
      %v228 = vadd.f32 0.0, %v227
      %229 = vdwg.mxu0
      %s230 = scalar_lea.vmem %s1, 8
      %v231 = vld [vmem:[%s230] sm:$0xf]
      %v232 = vld [vmem:[%s230 + $0x4] sm:$0xf]
      %s233 = scalar_lea.vmem %s138, 64
      %v234 = vld [vmem:[%s233] sm:$0xf]
      %v235 = vld [vmem:[%s233 + $0x4] sm:$0xf]
      %v236 = vld [vmem:[%s233 + $0x8] sm:$0xf]
      %v237 = vld [vmem:[%s233 + $0xc] sm:$0xf]
      %v238 = vld [vmem:[%s233 + $0x10] sm:$0xf]
      %v239 = vld [vmem:[%s233 + $0x14] sm:$0xf]
      %v240 = vld [vmem:[%s233 + $0x18] sm:$0xf]
      %v241 = vld [vmem:[%s233 + $0x1c] sm:$0xf]
      %v242 = vld [vmem:[%s233 + $0x20] sm:$0xf]
      %v243 = vld [vmem:[%s233 + $0x24] sm:$0xf]
      %v244 = vld [vmem:[%s233 + $0x28] sm:$0xf]
      %v245 = vld [vmem:[%s233 + $0x2c] sm:$0xf]
      %v246 = vld [vmem:[%s233 + $0x30] sm:$0xf]
      %v247 = vld [vmem:[%s233 + $0x34] sm:$0xf]
      %v248 = vld [vmem:[%s233 + $0x38] sm:$0xf]
      %v249 = vld [vmem:[%s233 + $0x3c] sm:$0xf]
      %v252 = vunpack.c.l.b16 %v231
      %v253 = vunpack.c.l.b16 %v232
      %v254 = vpack.c.b16 %v253, %v252
      %v272 = vunpack.c.l.b16 %v234
      %v273 = vunpack.c.l.b16 %v235
      %v274 = vunpack.c.l.b16 %v236
      %v275 = vunpack.c.l.b16 %v237
      %v276 = vunpack.c.l.b16 %v238
      %v277 = vunpack.c.l.b16 %v239
      %v278 = vunpack.c.l.b16 %v240
      %v279 = vunpack.c.l.b16 %v241
      %v280 = vunpack.c.l.b16 %v242
      %v281 = vunpack.c.l.b16 %v243
      %v282 = vunpack.c.l.b16 %v244
      %v283 = vunpack.c.l.b16 %v245
      %v284 = vunpack.c.l.b16 %v246
      %v285 = vunpack.c.l.b16 %v247
      %v286 = vunpack.c.l.b16 %v248
      %v287 = vunpack.c.l.b16 %v249
      %v288 = vpack.c.b16 %v273, %v272
      %v289 = vpack.c.b16 %v275, %v274
      %v290 = vpack.c.b16 %v277, %v276
      %v291 = vpack.c.b16 %v279, %v278
      %v292 = vpack.c.b16 %v281, %v280
      %v293 = vpack.c.b16 %v283, %v282
      %v294 = vpack.c.b16 %v285, %v284
      %v295 = vpack.c.b16 %v287, %v286
      %304 = vmatpush.bf16.msra.mxu0 %v295
      %305 = vmatpush.bf16.msra.mxu0 %v294
      %306 = vmatpush.bf16.msra.mxu0 %v293
      %307 = vmatpush.bf16.msra.mxu0 %v292
      %308 = vmatpush.bf16.msra.mxu0 %v291
      %309 = vmatpush.bf16.msra.mxu0 %v290
      %310 = vmatpush.bf16.msra.mxu0 %v289
      %311 = vmatpush.bf16.msra.mxu0 %v288
      %312 = vmatmul.bf16.gmra.mxu0 %v254
      %v313 = vpop.f32.mrf.mxu0
      %v314 = vadd.f32 0.0, %v313
      %v315 = vpop.f32.mrf.mxu0
      %v316 = vadd.f32 0.0, %v315
      %317 = vdwg.mxu0
      %s318 = scalar_lea.vmem %s1, 16
      %v319 = vld [vmem:[%s318] sm:$0xf]
      %v320 = vld [vmem:[%s318 + $0x4] sm:$0xf]
      %s321 = scalar_lea.vmem %s138, 128
      %v322 = vld [vmem:[%s321] sm:$0xf]
      %v323 = vld [vmem:[%s321 + $0x4] sm:$0xf]
      %v324 = vld [vmem:[%s321 + $0x8] sm:$0xf]
      %v325 = vld [vmem:[%s321 + $0xc] sm:$0xf]
      %v326 = vld [vmem:[%s321 + $0x10] sm:$0xf]
      %v327 = vld [vmem:[%s321 + $0x14] sm:$0xf]
      %v328 = vld [vmem:[%s321 + $0x18] sm:$0xf]
      %v329 = vld [vmem:[%s321 + $0x1c] sm:$0xf]
      %v330 = vld [vmem:[%s321 + $0x20] sm:$0xf]
      %v331 = vld [vmem:[%s321 + $0x24] sm:$0xf]
      %v332 = vld [vmem:[%s321 + $0x28] sm:$0xf]
      %v333 = vld [vmem:[%s321 + $0x2c] sm:$0xf]
      %v334 = vld [vmem:[%s321 + $0x30] sm:$0xf]
      %v335 = vld [vmem:[%s321 + $0x34] sm:$0xf]
      %v336 = vld [vmem:[%s321 + $0x38] sm:$0xf]
      %v337 = vld [vmem:[%s321 + $0x3c] sm:$0xf]
      %v340 = vunpack.c.l.b16 %v319
      %v341 = vunpack.c.l.b16 %v320
      %v342 = vpack.c.b16 %v341, %v340
      %v360 = vunpack.c.l.b16 %v322
      %v361 = vunpack.c.l.b16 %v323
      %v362 = vunpack.c.l.b16 %v324
      %v363 = vunpack.c.l.b16 %v325
      %v364 = vunpack.c.l.b16 %v326
      %v365 = vunpack.c.l.b16 %v327
      %v366 = vunpack.c.l.b16 %v328
      %v367 = vunpack.c.l.b16 %v329
      %v368 = vunpack.c.l.b16 %v330
      %v369 = vunpack.c.l.b16 %v331
      %v370 = vunpack.c.l.b16 %v332
      %v371 = vunpack.c.l.b16 %v333
      %v372 = vunpack.c.l.b16 %v334
      %v373 = vunpack.c.l.b16 %v335
      %v374 = vunpack.c.l.b16 %v336
      %v375 = vunpack.c.l.b16 %v337
      %v376 = vpack.c.b16 %v361, %v360
      %v377 = vpack.c.b16 %v363, %v362
      %v378 = vpack.c.b16 %v365, %v364
      %v379 = vpack.c.b16 %v367, %v366
      %v380 = vpack.c.b16 %v369, %v368
      %v381 = vpack.c.b16 %v371, %v370
      %v382 = vpack.c.b16 %v373, %v372
      %v383 = vpack.c.b16 %v375, %v374
      %392 = vmatpush.bf16.msra.mxu0 %v383
      %393 = vmatpush.bf16.msra.mxu0 %v382
      %394 = vmatpush.bf16.msra.mxu0 %v381
      %395 = vmatpush.bf16.msra.mxu0 %v380
      %396 = vmatpush.bf16.msra.mxu0 %v379
      %397 = vmatpush.bf16.msra.mxu0 %v378
      %398 = vmatpush.bf16.msra.mxu0 %v377
      %399 = vmatpush.bf16.msra.mxu0 %v376
      %400 = vmatmul.bf16.gmra.mxu0 %v342
      %v401 = vpop.f32.mrf.mxu0
      %v402 = vadd.f32 0.0, %v401
      %v403 = vpop.f32.mrf.mxu0
      %v404 = vadd.f32 0.0, %v403
      %405 = vdwg.mxu0
      %s406 = scalar_lea.vmem %s1, 24
      %v407 = vld [vmem:[%s406] sm:$0xf]
      %v408 = vld [vmem:[%s406 + $0x4] sm:$0xf]
      %s409 = scalar_lea.vmem %s138, 192
      %v410 = vld [vmem:[%s409] sm:$0xf]
      %v411 = vld [vmem:[%s409 + $0x4] sm:$0xf]
      %v412 = vld [vmem:[%s409 + $0x8] sm:$0xf]
      %v413 = vld [vmem:[%s409 + $0xc] sm:$0xf]
      %v414 = vld [vmem:[%s409 + $0x10] sm:$0xf]
      %v415 = vld [vmem:[%s409 + $0x14] sm:$0xf]
      %v416 = vld [vmem:[%s409 + $0x18] sm:$0xf]
      %v417 = vld [vmem:[%s409 + $0x1c] sm:$0xf]
      %v418 = vld [vmem:[%s409 + $0x20] sm:$0xf]
      %v419 = vld [vmem:[%s409 + $0x24] sm:$0xf]
      %v420 = vld [vmem:[%s409 + $0x28] sm:$0xf]
      %v421 = vld [vmem:[%s409 + $0x2c] sm:$0xf]
      %v422 = vld [vmem:[%s409 + $0x30] sm:$0xf]
      %v423 = vld [vmem:[%s409 + $0x34] sm:$0xf]
      %v424 = vld [vmem:[%s409 + $0x38] sm:$0xf]
      %v425 = vld [vmem:[%s409 + $0x3c] sm:$0xf]
      %v428 = vunpack.c.l.b16 %v407
      %v429 = vunpack.c.l.b16 %v408
      %v430 = vpack.c.b16 %v429, %v428
      %v448 = vunpack.c.l.b16 %v410
      %v449 = vunpack.c.l.b16 %v411
      %v450 = vunpack.c.l.b16 %v412
      %v451 = vunpack.c.l.b16 %v413
      %v452 = vunpack.c.l.b16 %v414
      %v453 = vunpack.c.l.b16 %v415
      %v454 = vunpack.c.l.b16 %v416
      %v455 = vunpack.c.l.b16 %v417
      %v456 = vunpack.c.l.b16 %v418
      %v457 = vunpack.c.l.b16 %v419
      %v458 = vunpack.c.l.b16 %v420
      %v459 = vunpack.c.l.b16 %v421
      %v460 = vunpack.c.l.b16 %v422
      %v461 = vunpack.c.l.b16 %v423
      %v462 = vunpack.c.l.b16 %v424
      %v463 = vunpack.c.l.b16 %v425
      %v464 = vpack.c.b16 %v449, %v448
      %v465 = vpack.c.b16 %v451, %v450
      %v466 = vpack.c.b16 %v453, %v452
      %v467 = vpack.c.b16 %v455, %v454
      %v468 = vpack.c.b16 %v457, %v456
      %v469 = vpack.c.b16 %v459, %v458
      %v470 = vpack.c.b16 %v461, %v460
      %v471 = vpack.c.b16 %v463, %v462
      %480 = vmatpush.bf16.msra.mxu0 %v471
      %481 = vmatpush.bf16.msra.mxu0 %v470
      %482 = vmatpush.bf16.msra.mxu0 %v469
      %483 = vmatpush.bf16.msra.mxu0 %v468
      %484 = vmatpush.bf16.msra.mxu0 %v467
      %485 = vmatpush.bf16.msra.mxu0 %v466
      %486 = vmatpush.bf16.msra.mxu0 %v465
      %487 = vmatpush.bf16.msra.mxu0 %v464
      %488 = vmatmul.bf16.gmra.mxu0 %v430
      %v489 = vpop.f32.mrf.mxu0
      %v490 = vadd.f32 0.0, %v489
      %v491 = vpop.f32.mrf.mxu0
      %v492 = vadd.f32 0.0, %v491
      %493 = vdwg.mxu0
      %vm494 = vcmask 130048
      %v495 = vsel %vm494, %v226, 0.0
      %496 = vadd.xlane.f32.xlu0 %v495
      %v497 = vpop.xlane.xlu0 %496
      %v498 = vsel %vm494, %v228, 0.0
      %499 = vadd.xlane.f32.xlu0 %v498
      %v500 = vpop.xlane.xlu0 %499
      %v501 = vsel %vm494, %v314, 0.0
      %502 = vadd.xlane.f32.xlu0 %v501
      %v503 = vpop.xlane.xlu0 %502
      %v504 = vsel %vm494, %v316, 0.0
      %505 = vadd.xlane.f32.xlu0 %v504
      %v506 = vpop.xlane.xlu0 %505
      %v507 = vadd.f32 %v497, %v503
      %v508 = vadd.f32 %v500, %v506
      %v509 = vsel %vm494, %v402, 0.0
      %510 = vadd.xlane.f32.xlu0 %v509
      %v511 = vpop.xlane.xlu0 %510
      %v512 = vsel %vm494, %v404, 0.0
      %513 = vadd.xlane.f32.xlu0 %v512
      %v514 = vpop.xlane.xlu0 %513
      %v515 = vadd.f32 %v507, %v511
      %v516 = vadd.f32 %v508, %v514
      %v517 = vsel %vm494, %v490, 0.0
      %518 = vadd.xlane.f32.xlu0 %v517
      %v519 = vpop.xlane.xlu0 %518
      %v520 = vsel %vm494, %v492, 0.0
      %521 = vadd.xlane.f32.xlu0 %v520
      %v522 = vpop.xlane.xlu0 %521
      %v523 = vadd.f32 %v515, %v519
      %v524 = vadd.f32 %v516, %v522
      %v525 = vmul.f32 %v523, 0.015625
      %v526 = vmul.f32 %v524, 0.015625
      %v527 = vsub.f32 %v226, %v525
      %v528 = vsub.f32 %v228, %v526
      %v529 = vsub.f32 %v314, %v525
      %v530 = vsub.f32 %v316, %v526
      %v531 = vsub.f32 %v402, %v525
      %v532 = vsub.f32 %v404, %v526
      %v533 = vsub.f32 %v490, %v525
      %v534 = vsub.f32 %v492, %v526
      %v535 = vmul.f32 %v527, %v527
      %v536 = vmul.f32 %v528, %v528
      %v537 = vsel %vm494, %v535, 0.0
      %538 = vadd.xlane.f32.xlu0 %v537
      %v539 = vpop.xlane.xlu0 %538
      %v540 = vsel %vm494, %v536, 0.0
      %541 = vadd.xlane.f32.xlu0 %v540
      %v542 = vpop.xlane.xlu0 %541
      %v543 = vmul.f32 %v529, %v529
      %v544 = vmul.f32 %v530, %v530
      %v545 = vsel %vm494, %v543, 0.0
      %546 = vadd.xlane.f32.xlu0 %v545
      %v547 = vpop.xlane.xlu0 %546
      %v548 = vsel %vm494, %v544, 0.0
      %549 = vadd.xlane.f32.xlu0 %v548
      %v550 = vpop.xlane.xlu0 %549
      %v551 = vadd.f32 %v539, %v547
      %v552 = vadd.f32 %v542, %v550
      %v553 = vmul.f32 %v531, %v531
      %v554 = vmul.f32 %v532, %v532
      %v555 = vsel %vm494, %v553, 0.0
      %556 = vadd.xlane.f32.xlu0 %v555
      %v557 = vpop.xlane.xlu0 %556
      %v558 = vsel %vm494, %v554, 0.0
      %559 = vadd.xlane.f32.xlu0 %v558
      %v560 = vpop.xlane.xlu0 %559
      %v561 = vadd.f32 %v551, %v557
      %v562 = vadd.f32 %v552, %v560
      %v563 = vmul.f32 %v533, %v533
      %v564 = vmul.f32 %v534, %v534
      %v565 = vsel %vm494, %v563, 0.0
      %566 = vadd.xlane.f32.xlu0 %v565
      %v567 = vpop.xlane.xlu0 %566
      %v568 = vsel %vm494, %v564, 0.0
      %569 = vadd.xlane.f32.xlu0 %v568
      %v570 = vpop.xlane.xlu0 %569
      %v571 = vadd.f32 %v561, %v567
      %v572 = vadd.f32 %v562, %v570
      %v573 = vmul.f32 %v571, 0.015625
      %v574 = vmul.f32 %v572, 0.015625
      %v575 = vadd.f32 %v573, 1e-05
      %v576 = vadd.f32 %v574, 1e-05
      %v577 = vrsqrt.pop %v575
      %v578 = vmul.f32 %v577, %v575
      %v579 = vmul.f32 %v578, %v577
      %v580 = vmul.f32 0.5, %v579
      %v581 = vsub.f32 1.5, %v580
      %v582 = vmul.f32 %v577, %v581
      %vm583 = vweird.f32 %v575
      %vm584 = vweird.f32 %v577
      %vm585 = vmor %vm583, %vm584
      %v586 = vsel %vm585, %v577, %v582
      %v587 = vrsqrt.pop %v576
      %v588 = vmul.f32 %v587, %v576
      %v589 = vmul.f32 %v588, %v587
      %v590 = vmul.f32 0.5, %v589
      %v591 = vsub.f32 1.5, %v590
      %v592 = vmul.f32 %v587, %v591
      %vm593 = vweird.f32 %v576
      %vm594 = vweird.f32 %v587
      %vm595 = vmor %vm593, %vm594
      %v596 = vsel %vm595, %v587, %v592
      %v597 = vmul.f32 %v527, %v586
      %v598 = vmul.f32 %v528, %v596
      %v599 = vmul.f32 %v597, 0.01
      %v600 = vmul.f32 %v598, 0.01
      %v601 = vmax.f32 %v597, %v599
      %v602 = vmax.f32 %v598, %v600
      %v603 = vpack.c.bf16 %v601, %v601
      %v604 = vpack.c.bf16 %v602, %v602
      %vm605 = vcmask 125952
      %606 = vst.msk [vmem:[%s143] sm:$0xf] %vm605, %v603
      %607 = vst.msk [vmem:[%s143 + $0x4] sm:$0xf] %vm605, %v604
      %v608 = vmul.f32 %v529, %v586
      %v609 = vmul.f32 %v530, %v596
      %v610 = vmul.f32 %v608, 0.01
      %v611 = vmul.f32 %v609, 0.01
      %v612 = vmax.f32 %v608, %v610
      %v613 = vmax.f32 %v609, %v611
      %v614 = vpack.c.bf16 %v612, %v612
      %v615 = vpack.c.bf16 %v613, %v613
      %s616 = scalar_lea.vmem %s143, 8
      %617 = vst.msk [vmem:[%s616] sm:$0xf] %vm605, %v614
      %618 = vst.msk [vmem:[%s616 + $0x4] sm:$0xf] %vm605, %v615
      %v619 = vmul.f32 %v531, %v586
      %v620 = vmul.f32 %v532, %v596
      %v621 = vmul.f32 %v619, 0.01
      %v622 = vmul.f32 %v620, 0.01
      %v623 = vmax.f32 %v619, %v621
      %v624 = vmax.f32 %v620, %v622
      %v625 = vpack.c.bf16 %v623, %v623
      %v626 = vpack.c.bf16 %v624, %v624
      %s627 = scalar_lea.vmem %s143, 16
      %628 = vst.msk [vmem:[%s627] sm:$0xf] %vm605, %v625
      %629 = vst.msk [vmem:[%s627 + $0x4] sm:$0xf] %vm605, %v626
      %v630 = vmul.f32 %v533, %v586
      %v631 = vmul.f32 %v534, %v596
      %v632 = vmul.f32 %v630, 0.01
      %v633 = vmul.f32 %v631, 0.01
      %v634 = vmax.f32 %v630, %v632
      %v635 = vmax.f32 %v631, %v633
      %v636 = vpack.c.bf16 %v634, %v634
      %v637 = vpack.c.bf16 %v635, %v635
      %s638 = scalar_lea.vmem %s143, 24
      %639 = vst.msk [vmem:[%s638] sm:$0xf] %vm605, %v636
      %640 = vst.msk [vmem:[%s638 + $0x4] sm:$0xf] %vm605, %v637
      %p641 = scmp.lt.s32.totalorder %s13, 1
      %s642 = scalar_select %p641, %s13, 1
      %s643 = smul.addr %s642, 8
      %s644 = smul.addr %s643, 4
      %s645 = scalar_lea.vmem %s2, %s644
      // Predicated region
      $region29: #{a_call__.5} parent=27 // pred_check
        %p646 = pneg %p78
      $region30: #{a_call__.5} parent=27 // pred_check_branch
        %648 = sbr.rel (%p646) target = $region32
      $region31: #{a_call__.5} parent=27 // pred_region
        _
      $region32: #{a_call__.5} parent=27 // pred_fallthru
        _
    $region28: #{a_call__.5} parent=5 // pred_fallthru
      _
    %p649 = scmp.le.s32.totalorder 2, %s8
    // Predicated region
    $region33: #{a_call__.5} parent=5 // pred_check
      %p650 = pneg %p649
    $region34: #{a_call__.5} parent=5 // pred_check_branch
      %652 = sbr.rel (%p650) target = $region36
    $region35: #{a_call__.5} parent=5 // pred_region
      %s653 = ssub.s32 %s8, 2
      // Predicated region
      $region37: #{a_call__.5} parent=35 // pred_check
        %p654 = pneg %p84
      $region38: #{a_call__.5} parent=35 // pred_check_branch
        %656 = sbr.rel (%p654) target = $region40
      $region39: #{a_call__.5} parent=35 // pred_region
        %p657 = scmp.lt.s32.totalorder %s14, 1
        %s658 = scalar_select %p657, %s14, 1
        %s659 = smul.addr %s658, 8
        %s660 = smul.addr %s659, 4
        %s661 = scalar_lea.vmem %s2, %s660
      $region40: #{a_call__.5} parent=35 // pred_fallthru
        _
    $region36: #{a_call__.5} parent=5 // pred_fallthru
      _
  $region6: #{a_call__.5} parent=0 // loop_footer
    %s12 = sadd.s32 1, %s8
  $region7: #{a_call__.5} parent=0 // loop_footer_branch
    %7 = sbr.rel target = $region3
  $region8: #{a_call__.5} parent=0 // loop_exit
    _

// kernel: a_call__.6
$region0: #{a_call__.6}
  #allocation0 [shape = 'u32[]', space=smem, size = 0x4, offset = 0x4, fixed_abs, tag = 'smem constant byte address 0x4 - core index']
  #allocation1 [shape = 'u32[72,128]{1,0:T(1,128)}', space=vmem, size = 0x9000, scoped, tag = 'internal scratch']
  %s0 = inlined_call_operand.vmem [shape: bf16[2,4,64,64], index: 0, kind: input, shape index: {}]
  %s1 = inlined_call_operand.vmem [shape: bf16[4,8,64], index: 1, kind: input, shape index: {}]
  %s2 = inlined_call_operand.vmem [shape: bf16[2,4,8,64], index: 2, kind: output, shape index: {}]
  %s3 = sld [smem:[#allocation0]]
  $region41: #{a_call__.6} parent=0
    _
  %s5 = ssub.s32 1, %s3
  %s6 = scalar_select 0, %s5, %s3
  loop: start=0, step=1, limit=4
  $region2: #{a_call__.6} parent=0 // loop_pre_header
    _
  $region3: #{a_call__.6} parent=0 // loop_header
    %s8 = sphi 0, %s12
    %p9 = scmp.ge.s32.totalorder %s8, 4
    %s18 = sphi 0, %s20
    %s21 = sphi 0, %s18
    %s22 = sphi 0, %s21
    %s38 = sphi 0, %s22
    %s42 = sphi 0, %s42
    %s44 = sphi 0, %s42
    %s45 = sphi 0, %s44
    %s59 = sphi 0, %s45
    %s65 = sphi 0, %s67
    %s68 = sphi 0, %s65
    %s69 = sphi 0, %s68
    %s85 = sphi 0, %s69
  $region4: #{a_call__.6} parent=0 // loop_header_branch
    %11 = sbr.rel (%p9) target = $region8
  $region5: #{a_call__.6} parent=0 // loop_body
    %s13 = ssub.s32 %s8, 1
    %s14 = ssub.s32 %s8, 2
    %s15 = sadd.s32 %s8, 1
    %s16 = ssub.s32 %s8, %s15
    %p17 = scmp.eq.s32.totalorder %s16, 0
    %s19 = sadd.s32 %s18, 1
    %s20 = scalar_select %p17, %s18, %s19
    %p23 = pneg %p17
    %p24 = scmp.eq.s32.totalorder %s8, 1
    %p25 = por %p23, %p24
    %p26 = scmp.ne.s32.totalorder %s18, %s21
    %p27 = scmp.eq.s32.totalorder %s8, 0
    %p28 = por %p26, %p27
    %p29 = scmp.ne.s32.totalorder %s18, %s21
    %p30 = scmp.eq.s32.totalorder %s13, 1
    %p31 = por %p29, %p30
    %p32 = scmp.ne.s32.totalorder %s21, %s22
    %p33 = scmp.eq.s32.totalorder %s13, 0
    %p34 = por %p32, %p33
    %p35 = scmp.ne.s32.totalorder %s21, %s22
    %p36 = scmp.eq.s32.totalorder %s14, 1
    %p37 = por %p35, %p36
    %p39 = scmp.ne.s32.totalorder %s22, %s38
    %p40 = scmp.eq.s32.totalorder %s14, 0
    %p41 = por %p39, %p40
    %s43 = sadd.s32 %s42, 1
    %p46 = scmp.eq.s32.totalorder %s8, 1
    %p47 = scmp.ne.s32.totalorder %s42, %s44
    %p48 = scmp.eq.s32.totalorder %s8, 0
    %p49 = por %p47, %p48
    %p50 = scmp.ne.s32.totalorder %s42, %s44
    %p51 = scmp.eq.s32.totalorder %s13, 1
    %p52 = por %p50, %p51
    %p53 = scmp.ne.s32.totalorder %s44, %s45
    %p54 = scmp.eq.s32.totalorder %s13, 0
    %p55 = por %p53, %p54
    %p56 = scmp.ne.s32.totalorder %s44, %s45
    %p57 = scmp.eq.s32.totalorder %s14, 1
    %p58 = por %p56, %p57
    %p60 = scmp.ne.s32.totalorder %s45, %s59
    %p61 = scmp.eq.s32.totalorder %s14, 0
    %p62 = por %p60, %p61
    %s63 = ssub.s32 %s8, %s15
    %p64 = scmp.eq.s32.totalorder %s63, 0
    %s66 = sadd.s32 %s65, 1
    %s67 = scalar_select %p64, %s65, %s66
    %p70 = pneg %p64
    %p71 = scmp.eq.s32.totalorder %s8, 1
    %p72 = por %p70, %p71
    %p73 = scmp.ne.s32.totalorder %s65, %s68
    %p74 = scmp.eq.s32.totalorder %s8, 0
    %p75 = por %p73, %p74
    %p76 = scmp.ne.s32.totalorder %s65, %s68
    %p77 = scmp.eq.s32.totalorder %s13, 1
    %p78 = por %p76, %p77
    %p79 = scmp.ne.s32.totalorder %s68, %s69
    %p80 = scmp.eq.s32.totalorder %s13, 0
    %p81 = por %p79, %p80
    %p82 = scmp.ne.s32.totalorder %s68, %s69
    %p83 = scmp.eq.s32.totalorder %s14, 1
    %p84 = por %p82, %p83
    %p86 = scmp.ne.s32.totalorder %s69, %s85
    %p87 = scmp.eq.s32.totalorder %s14, 0
    %p88 = por %p86, %p87
    %p89 = scmp.le.s32.totalorder 1, %s8
    %p90 = scmp.lt.s32.totalorder %s8, 3
    %p91 = pnand %p89, %p90
    %p92 = pneg %p91
    // Predicated region
    $region9: #{a_call__.6} parent=5 // pred_check
      _
    $region10: #{a_call__.6} parent=5 // pred_check_branch
      %94 = sbr.rel (%p91) target = $region12
    $region11: #{a_call__.6} parent=5 // pred_region
      %s95 = ssub.s32 %s8, 1
      // Predicated region
      $region13: #{a_call__.6} parent=11 // pred_check
        %p96 = pneg %p55
      $region14: #{a_call__.6} parent=11 // pred_check_branch
        %98 = sbr.rel (%p96) target = $region16
      $region15: #{a_call__.6} parent=11 // pred_region
        _
      $region16: #{a_call__.6} parent=11 // pred_fallthru
        _
    $region12: #{a_call__.6} parent=5 // pred_fallthru
      _
    %p99 = scmp.lt.s32.totalorder %s8, 2
    // Predicated region
    $region17: #{a_call__.6} parent=5 // pred_check
      %p100 = pneg %p99
    $region18: #{a_call__.6} parent=5 // pred_check_branch
      %102 = sbr.rel (%p100) target = $region20
    $region19: #{a_call__.6} parent=5 // pred_region
      // Predicated region
      $region21: #{a_call__.6} parent=19 // pred_check
        %p103 = pneg %p28
      $region22: #{a_call__.6} parent=19 // pred_check_branch
        %105 = sbr.rel (%p103) target = $region24
      $region23: #{a_call__.6} parent=19 // pred_region
        %p106 = scmp.lt.s32.totalorder %s8, 1
        %s107 = scalar_select %p106, %s8, 1
        %s108 = smul.addr %s107, 32
        %s109 = smul.addr %s108, 4
        %s110 = scalar_lea.vmem %s0, %s109
      $region24: #{a_call__.6} parent=19 // pred_fallthru
        _
    $region20: #{a_call__.6} parent=5 // pred_fallthru
      _
    %p111 = scmp.le.s32.totalorder 1, %s8
    %p112 = scmp.lt.s32.totalorder %s8, 3
    %p113 = pnand %p111, %p112
    %p114 = pneg %p113
    // Predicated region
    $region25: #{a_call__.6} parent=5 // pred_check
      _
    $region26: #{a_call__.6} parent=5 // pred_check_branch
      %116 = sbr.rel (%p113) target = $region28
    $region27: #{a_call__.6} parent=5 // pred_region
      %s117 = ssub.s32 %s8, 1
      %p118 = scmp.lt.s32.totalorder %s13, 1
      %s119 = scalar_select %p118, %s13, 1
      %s120 = smul.addr %s119, 32
      %s121 = smul.addr %s120, 4
      %s122 = scalar_lea.vmem %s0, %s121
      %p123 = pneg %p34
      %p124 = pneg %p31
      %p125 = pneg %p55
      %p126 = pneg %p52
      %p127 = pneg %p81
      %p128 = pneg %p78
      %p129 = scmp.lt.s32.totalorder %s13, 1
      %s130 = scalar_select %p129, %s13, 1
      %s131 = smul.addr %s130, 4
      %s132 = smul.addr %s131, 4
      %s133 = scalar_lea.vmem %s2, %s132
      %p134 = scmp.lt.s32.totalorder %s13, 1
      %s135 = scalar_select %p134, %s13, 1
      %s136 = smul.addr %s135, 32
      %s137 = smul.addr %s136, 4
      %s138 = scalar_lea.vmem %s0, %s137
      %p139 = scmp.lt.s32.totalorder %s13, 1
      %s140 = scalar_select %p139, %s13, 1
      %s141 = smul.addr %s140, 4
      %s142 = smul.addr %s141, 4
      %s143 = scalar_lea.vmem %s2, %s142
      %v145 = vld [vmem:[%s1] sm:$0xf]
      %v146 = vld [vmem:[%s138] sm:$0xf]
      %v147 = vld [vmem:[%s138 + $0x4] sm:$0xf]
      %v148 = vld [vmem:[%s138 + $0x8] sm:$0xf]
      %v149 = vld [vmem:[%s138 + $0xc] sm:$0xf]
      %v150 = vld [vmem:[%s138 + $0x10] sm:$0xf]
      %v151 = vld [vmem:[%s138 + $0x14] sm:$0xf]
      %v152 = vld [vmem:[%s138 + $0x18] sm:$0xf]
      %v153 = vld [vmem:[%s138 + $0x1c] sm:$0xf]
      %v162 = vunpack.c.l.b16 %v146
      %v163 = vunpack.c.l.b16 %v147
      %v164 = vunpack.c.l.b16 %v148
      %v165 = vunpack.c.l.b16 %v149
      %v166 = vunpack.c.l.b16 %v150
      %v167 = vunpack.c.l.b16 %v151
      %v168 = vunpack.c.l.b16 %v152
      %v169 = vunpack.c.l.b16 %v153
      %v170 = vpack.c.b16 %v163, %v162
      %v171 = vpack.c.b16 %v165, %v164
      %v172 = vpack.c.b16 %v167, %v166
      %v173 = vpack.c.b16 %v169, %v168
      %vm178 = vcmask 523264
      %v180 = vsel %vm178, %v145, 0
      %182 = vmatpush.bf16.msra.mxu0 0
      %183 = vmatpush.bf16.msra.mxu0 0
      %184 = vmatpush.bf16.msra.mxu0 0
      %185 = vmatpush.bf16.msra.mxu0 0
      %186 = vmatpush.bf16.msra.mxu0 %v173
      %187 = vmatpush.bf16.msra.mxu0 %v172
      %188 = vmatpush.bf16.msra.mxu0 %v171
      %189 = vmatpush.bf16.msra.mxu0 %v170
      %190 = vmatmul.bf16.gmra.mxu0 %v180
      %v191 = vpop.f32.mrf.mxu0
      %v192 = vadd.f32 0.0, %v191
      %v193 = vpop.f32.mrf.mxu0
      %194 = vdwg.mxu0
      %s195 = scalar_lea.vmem %s1, 4
      %v196 = vld [vmem:[%s195] sm:$0xf]
      %s197 = scalar_lea.vmem %s138, 32
      %v198 = vld [vmem:[%s197] sm:$0xf]
      %v199 = vld [vmem:[%s197 + $0x4] sm:$0xf]
      %v200 = vld [vmem:[%s197 + $0x8] sm:$0xf]
      %v201 = vld [vmem:[%s197 + $0xc] sm:$0xf]
      %v202 = vld [vmem:[%s197 + $0x10] sm:$0xf]
      %v203 = vld [vmem:[%s197 + $0x14] sm:$0xf]
      %v204 = vld [vmem:[%s197 + $0x18] sm:$0xf]
      %v205 = vld [vmem:[%s197 + $0x1c] sm:$0xf]
      %v214 = vunpack.c.l.b16 %v198
      %v215 = vunpack.c.l.b16 %v199
      %v216 = vunpack.c.l.b16 %v200
      %v217 = vunpack.c.l.b16 %v201
      %v218 = vunpack.c.l.b16 %v202
      %v219 = vunpack.c.l.b16 %v203
      %v220 = vunpack.c.l.b16 %v204
      %v221 = vunpack.c.l.b16 %v205
      %v222 = vpack.c.b16 %v215, %v214
      %v223 = vpack.c.b16 %v217, %v216
      %v224 = vpack.c.b16 %v219, %v218
      %v225 = vpack.c.b16 %v221, %v220
      %v231 = vsel %vm178, %v196, 0
      %233 = vmatpush.bf16.msra.mxu0 0
      %234 = vmatpush.bf16.msra.mxu0 0
      %235 = vmatpush.bf16.msra.mxu0 0
      %236 = vmatpush.bf16.msra.mxu0 0
      %237 = vmatpush.bf16.msra.mxu0 %v225
      %238 = vmatpush.bf16.msra.mxu0 %v224
      %239 = vmatpush.bf16.msra.mxu0 %v223
      %240 = vmatpush.bf16.msra.mxu0 %v222
      %241 = vmatmul.bf16.gmra.mxu0 %v231
      %v242 = vpop.f32.mrf.mxu0
      %v243 = vadd.f32 0.0, %v242
      %v244 = vpop.f32.mrf.mxu0
      %245 = vdwg.mxu0
      %s246 = scalar_lea.vmem %s1, 8
      %v247 = vld [vmem:[%s246] sm:$0xf]
      %s248 = scalar_lea.vmem %s138, 64
      %v249 = vld [vmem:[%s248] sm:$0xf]
      %v250 = vld [vmem:[%s248 + $0x4] sm:$0xf]
      %v251 = vld [vmem:[%s248 + $0x8] sm:$0xf]
      %v252 = vld [vmem:[%s248 + $0xc] sm:$0xf]
      %v253 = vld [vmem:[%s248 + $0x10] sm:$0xf]
      %v254 = vld [vmem:[%s248 + $0x14] sm:$0xf]
      %v255 = vld [vmem:[%s248 + $0x18] sm:$0xf]
      %v256 = vld [vmem:[%s248 + $0x1c] sm:$0xf]
      %v265 = vunpack.c.l.b16 %v249
      %v266 = vunpack.c.l.b16 %v250
      %v267 = vunpack.c.l.b16 %v251
      %v268 = vunpack.c.l.b16 %v252
      %v269 = vunpack.c.l.b16 %v253
      %v270 = vunpack.c.l.b16 %v254
      %v271 = vunpack.c.l.b16 %v255
      %v272 = vunpack.c.l.b16 %v256
      %v273 = vpack.c.b16 %v266, %v265
      %v274 = vpack.c.b16 %v268, %v267
      %v275 = vpack.c.b16 %v270, %v269
      %v276 = vpack.c.b16 %v272, %v271
      %v282 = vsel %vm178, %v247, 0
      %284 = vmatpush.bf16.msra.mxu0 0
      %285 = vmatpush.bf16.msra.mxu0 0
      %286 = vmatpush.bf16.msra.mxu0 0
      %287 = vmatpush.bf16.msra.mxu0 0
      %288 = vmatpush.bf16.msra.mxu0 %v276
      %289 = vmatpush.bf16.msra.mxu0 %v275
      %290 = vmatpush.bf16.msra.mxu0 %v274
      %291 = vmatpush.bf16.msra.mxu0 %v273
      %292 = vmatmul.bf16.gmra.mxu0 %v282
      %v293 = vpop.f32.mrf.mxu0
      %v294 = vadd.f32 0.0, %v293
      %v295 = vpop.f32.mrf.mxu0
      %296 = vdwg.mxu0
      %s297 = scalar_lea.vmem %s1, 12
      %v298 = vld [vmem:[%s297] sm:$0xf]
      %s299 = scalar_lea.vmem %s138, 96
      %v300 = vld [vmem:[%s299] sm:$0xf]
      %v301 = vld [vmem:[%s299 + $0x4] sm:$0xf]
      %v302 = vld [vmem:[%s299 + $0x8] sm:$0xf]
      %v303 = vld [vmem:[%s299 + $0xc] sm:$0xf]
      %v304 = vld [vmem:[%s299 + $0x10] sm:$0xf]
      %v305 = vld [vmem:[%s299 + $0x14] sm:$0xf]
      %v306 = vld [vmem:[%s299 + $0x18] sm:$0xf]
      %v307 = vld [vmem:[%s299 + $0x1c] sm:$0xf]
      %v316 = vunpack.c.l.b16 %v300
      %v317 = vunpack.c.l.b16 %v301
      %v318 = vunpack.c.l.b16 %v302
      %v319 = vunpack.c.l.b16 %v303
      %v320 = vunpack.c.l.b16 %v304
      %v321 = vunpack.c.l.b16 %v305
      %v322 = vunpack.c.l.b16 %v306
      %v323 = vunpack.c.l.b16 %v307
      %v324 = vpack.c.b16 %v317, %v316
      %v325 = vpack.c.b16 %v319, %v318
      %v326 = vpack.c.b16 %v321, %v320
      %v327 = vpack.c.b16 %v323, %v322
      %v333 = vsel %vm178, %v298, 0
      %335 = vmatpush.bf16.msra.mxu0 0
      %336 = vmatpush.bf16.msra.mxu0 0
      %337 = vmatpush.bf16.msra.mxu0 0
      %338 = vmatpush.bf16.msra.mxu0 0
      %339 = vmatpush.bf16.msra.mxu0 %v327
      %340 = vmatpush.bf16.msra.mxu0 %v326
      %341 = vmatpush.bf16.msra.mxu0 %v325
      %342 = vmatpush.bf16.msra.mxu0 %v324
      %343 = vmatmul.bf16.gmra.mxu0 %v333
      %v344 = vpop.f32.mrf.mxu0
      %v345 = vadd.f32 0.0, %v344
      %v346 = vpop.f32.mrf.mxu0
      %347 = vdwg.mxu0
      %v348 = vsel %vm178, %v192, 0.0
      %349 = vadd.xlane.f32.xlu0 %v348
      %v350 = vpop.xlane.xlu0 %349
      %v351 = vsel %vm178, %v243, 0.0
      %352 = vadd.xlane.f32.xlu0 %v351
      %v353 = vpop.xlane.xlu0 %352
      %v354 = vadd.f32 %v350, %v353
      %v355 = vsel %vm178, %v294, 0.0
      %356 = vadd.xlane.f32.xlu0 %v355
      %v357 = vpop.xlane.xlu0 %356
      %v358 = vadd.f32 %v354, %v357
      %v359 = vsel %vm178, %v345, 0.0
      %360 = vadd.xlane.f32.xlu0 %v359
      %v361 = vpop.xlane.xlu0 %360
      %v362 = vadd.f32 %v358, %v361
      %v363 = vmul.f32 %v362, 0.00390625
      %v364 = vsub.f32 %v192, %v363
      %v365 = vsub.f32 %v243, %v363
      %v366 = vsub.f32 %v294, %v363
      %v367 = vsub.f32 %v345, %v363
      %v368 = vmul.f32 %v364, %v364
      %v369 = vsel %vm178, %v368, 0.0
      %370 = vadd.xlane.f32.xlu0 %v369
      %v371 = vpop.xlane.xlu0 %370
      %v372 = vmul.f32 %v365, %v365
      %v373 = vsel %vm178, %v372, 0.0
      %374 = vadd.xlane.f32.xlu0 %v373
      %v375 = vpop.xlane.xlu0 %374
      %v376 = vadd.f32 %v371, %v375
      %v377 = vmul.f32 %v366, %v366
      %v378 = vsel %vm178, %v377, 0.0
      %379 = vadd.xlane.f32.xlu0 %v378
      %v380 = vpop.xlane.xlu0 %379
      %v381 = vadd.f32 %v376, %v380
      %v382 = vmul.f32 %v367, %v367
      %v383 = vsel %vm178, %v382, 0.0
      %384 = vadd.xlane.f32.xlu0 %v383
      %v385 = vpop.xlane.xlu0 %384
      %v386 = vadd.f32 %v381, %v385
      %v387 = vmul.f32 %v386, 0.00390625
      %v388 = vadd.f32 %v387, 1e-05
      %v389 = vrsqrt.pop %v388
      %v390 = vmul.f32 %v389, %v388
      %v391 = vmul.f32 %v390, %v389
      %v392 = vmul.f32 0.5, %v391
      %v393 = vsub.f32 1.5, %v392
      %v394 = vmul.f32 %v389, %v393
      %vm395 = vweird.f32 %v388
      %vm396 = vweird.f32 %v389
      %vm397 = vmor %vm395, %vm396
      %v398 = vsel %vm397, %v389, %v394
      %v399 = vmul.f32 %v364, %v398
      %v400 = vmul.f32 %v399, 0.01
      %v401 = vmax.f32 %v399, %v400
      %v402 = vpack.c.bf16 %v401, %v401
      %vm403 = vcmask 519168
      %404 = vst.msk [vmem:[%s143] sm:$0xf] %vm403, %v402
      %v405 = vmul.f32 %v365, %v398
      %v406 = vmul.f32 %v405, 0.01
      %v407 = vmax.f32 %v405, %v406
      %v408 = vpack.c.bf16 %v407, %v407
      %s409 = scalar_lea.vmem %s143, 4
      %410 = vst.msk [vmem:[%s409] sm:$0xf] %vm403, %v408
      %v411 = vmul.f32 %v366, %v398
      %v412 = vmul.f32 %v411, 0.01
      %v413 = vmax.f32 %v411, %v412
      %v414 = vpack.c.bf16 %v413, %v413
      %s415 = scalar_lea.vmem %s143, 8
      %416 = vst.msk [vmem:[%s415] sm:$0xf] %vm403, %v414
      %v417 = vmul.f32 %v367, %v398
      %v418 = vmul.f32 %v417, 0.01
      %v419 = vmax.f32 %v417, %v418
      %v420 = vpack.c.bf16 %v419, %v419
      %s421 = scalar_lea.vmem %s143, 12
      %422 = vst.msk [vmem:[%s421] sm:$0xf] %vm403, %v420
      %p423 = scmp.lt.s32.totalorder %s13, 1
      %s424 = scalar_select %p423, %s13, 1
      %s425 = smul.addr %s424, 4
      %s426 = smul.addr %s425, 4
      %s427 = scalar_lea.vmem %s2, %s426
      // Predicated region
      $region29: #{a_call__.6} parent=27 // pred_check
        %p428 = pneg %p78
      $region30: #{a_call__.6} parent=27 // pred_check_branch
        %430 = sbr.rel (%p428) target = $region32
      $region31: #{a_call__.6} parent=27 // pred_region
        _
      $region32: #{a_call__.6} parent=27 // pred_fallthru
        _
    $region28: #{a_call__.6} parent=5 // pred_fallthru
      _
    %p431 = scmp.le.s32.totalorder 2, %s8
    // Predicated region
    $region33: #{a_call__.6} parent=5 // pred_check
      %p432 = pneg %p431
    $region34: #{a_call__.6} parent=5 // pred_check_branch
      %434 = sbr.rel (%p432) target = $region36
    $region35: #{a_call__.6} parent=5 // pred_region
      %s435 = ssub.s32 %s8, 2
      // Predicated region
      $region37: #{a_call__.6} parent=35 // pred_check
        %p436 = pneg %p84
      $region38: #{a_call__.6} parent=35 // pred_check_branch
        %438 = sbr.rel (%p436) target = $region40
      $region39: #{a_call__.6} parent=35 // pred_region
        %p439 = scmp.lt.s32.totalorder %s14, 1
        %s440 = scalar_select %p439, %s14, 1
        %s441 = smul.addr %s440, 4
        %s442 = smul.addr %s441, 4
        %s443 = scalar_lea.vmem %s2, %s442
      $region40: #{a_call__.6} parent=35 // pred_fallthru
        _
    $region36: #{a_call__.6} parent=5 // pred_fallthru
      _
  $region6: #{a_call__.6} parent=0 // loop_footer
    %s12 = sadd.s32 1, %s8
  $region7: #{a_call__.6} parent=0 // loop_footer_branch
    %7 = sbr.rel target = $region3
  $region8: #{a_call__.6} parent=0 // loop_exit
    _

// kernel: a_call__.7
$region0: #{a_call__.7}
  #allocation0 [shape = 'u32[]', space=smem, size = 0x4, offset = 0x4, fixed_abs, tag = 'smem constant byte address 0x4 - core index']
  #allocation1 [shape = 'u32[72,128]{1,0:T(1,128)}', space=vmem, size = 0x9000, scoped, tag = 'internal scratch']
  %s0 = inlined_call_operand.vmem [shape: bf16[2,4,32,256], index: 0, kind: input, shape index: {}]
  %s1 = inlined_call_operand.vmem [shape: bf16[4,8,32], index: 1, kind: input, shape index: {}]
  %s2 = inlined_call_operand.vmem [shape: f32[2,4,8,256], index: 2, kind: output, shape index: {}]
  %s3 = sld [smem:[#allocation0]]
  $region41: #{a_call__.7} parent=0
    _
  %s5 = ssub.s32 1, %s3
  %s6 = scalar_select 0, %s5, %s3
  loop: start=0, step=1, limit=4
  $region2: #{a_call__.7} parent=0 // loop_pre_header
    _
  $region3: #{a_call__.7} parent=0 // loop_header
    %s8 = sphi 0, %s12
    %p9 = scmp.ge.s32.totalorder %s8, 4
    %s18 = sphi 0, %s20
    %s21 = sphi 0, %s18
    %s22 = sphi 0, %s21
    %s38 = sphi 0, %s22
    %s42 = sphi 0, %s42
    %s44 = sphi 0, %s42
    %s45 = sphi 0, %s44
    %s59 = sphi 0, %s45
    %s65 = sphi 0, %s67
    %s68 = sphi 0, %s65
    %s69 = sphi 0, %s68
    %s85 = sphi 0, %s69
  $region4: #{a_call__.7} parent=0 // loop_header_branch
    %11 = sbr.rel (%p9) target = $region8
  $region5: #{a_call__.7} parent=0 // loop_body
    %s13 = ssub.s32 %s8, 1
    %s14 = ssub.s32 %s8, 2
    %s15 = sadd.s32 %s8, 1
    %s16 = ssub.s32 %s8, %s15
    %p17 = scmp.eq.s32.totalorder %s16, 0
    %s19 = sadd.s32 %s18, 1
    %s20 = scalar_select %p17, %s18, %s19
    %p23 = pneg %p17
    %p24 = scmp.eq.s32.totalorder %s8, 1
    %p25 = por %p23, %p24
    %p26 = scmp.ne.s32.totalorder %s18, %s21
    %p27 = scmp.eq.s32.totalorder %s8, 0
    %p28 = por %p26, %p27
    %p29 = scmp.ne.s32.totalorder %s18, %s21
    %p30 = scmp.eq.s32.totalorder %s13, 1
    %p31 = por %p29, %p30
    %p32 = scmp.ne.s32.totalorder %s21, %s22
    %p33 = scmp.eq.s32.totalorder %s13, 0
    %p34 = por %p32, %p33
    %p35 = scmp.ne.s32.totalorder %s21, %s22
    %p36 = scmp.eq.s32.totalorder %s14, 1
    %p37 = por %p35, %p36
    %p39 = scmp.ne.s32.totalorder %s22, %s38
    %p40 = scmp.eq.s32.totalorder %s14, 0
    %p41 = por %p39, %p40
    %s43 = sadd.s32 %s42, 1
    %p46 = scmp.eq.s32.totalorder %s8, 1
    %p47 = scmp.ne.s32.totalorder %s42, %s44
    %p48 = scmp.eq.s32.totalorder %s8, 0
    %p49 = por %p47, %p48
    %p50 = scmp.ne.s32.totalorder %s42, %s44
    %p51 = scmp.eq.s32.totalorder %s13, 1
    %p52 = por %p50, %p51
    %p53 = scmp.ne.s32.totalorder %s44, %s45
    %p54 = scmp.eq.s32.totalorder %s13, 0
    %p55 = por %p53, %p54
    %p56 = scmp.ne.s32.totalorder %s44, %s45
    %p57 = scmp.eq.s32.totalorder %s14, 1
    %p58 = por %p56, %p57
    %p60 = scmp.ne.s32.totalorder %s45, %s59
    %p61 = scmp.eq.s32.totalorder %s14, 0
    %p62 = por %p60, %p61
    %s63 = ssub.s32 %s8, %s15
    %p64 = scmp.eq.s32.totalorder %s63, 0
    %s66 = sadd.s32 %s65, 1
    %s67 = scalar_select %p64, %s65, %s66
    %p70 = pneg %p64
    %p71 = scmp.eq.s32.totalorder %s8, 1
    %p72 = por %p70, %p71
    %p73 = scmp.ne.s32.totalorder %s65, %s68
    %p74 = scmp.eq.s32.totalorder %s8, 0
    %p75 = por %p73, %p74
    %p76 = scmp.ne.s32.totalorder %s65, %s68
    %p77 = scmp.eq.s32.totalorder %s13, 1
    %p78 = por %p76, %p77
    %p79 = scmp.ne.s32.totalorder %s68, %s69
    %p80 = scmp.eq.s32.totalorder %s13, 0
    %p81 = por %p79, %p80
    %p82 = scmp.ne.s32.totalorder %s68, %s69
    %p83 = scmp.eq.s32.totalorder %s14, 1
    %p84 = por %p82, %p83
    %p86 = scmp.ne.s32.totalorder %s69, %s85
    %p87 = scmp.eq.s32.totalorder %s14, 0
    %p88 = por %p86, %p87
    %p89 = scmp.le.s32.totalorder 1, %s8
    %p90 = scmp.lt.s32.totalorder %s8, 3
    %p91 = pnand %p89, %p90
    %p92 = pneg %p91
    // Predicated region
    $region9: #{a_call__.7} parent=5 // pred_check
      _
    $region10: #{a_call__.7} parent=5 // pred_check_branch
      %94 = sbr.rel (%p91) target = $region12
    $region11: #{a_call__.7} parent=5 // pred_region
      %s95 = ssub.s32 %s8, 1
      // Predicated region
      $region13: #{a_call__.7} parent=11 // pred_check
        %p96 = pneg %p55
      $region14: #{a_call__.7} parent=11 // pred_check_branch
        %98 = sbr.rel (%p96) target = $region16
      $region15: #{a_call__.7} parent=11 // pred_region
        _
      $region16: #{a_call__.7} parent=11 // pred_fallthru
        _
    $region12: #{a_call__.7} parent=5 // pred_fallthru
      _
    %p99 = scmp.lt.s32.totalorder %s8, 2
    // Predicated region
    $region17: #{a_call__.7} parent=5 // pred_check
      %p100 = pneg %p99
    $region18: #{a_call__.7} parent=5 // pred_check_branch
      %102 = sbr.rel (%p100) target = $region20
    $region19: #{a_call__.7} parent=5 // pred_region
      // Predicated region
      $region21: #{a_call__.7} parent=19 // pred_check
        %p103 = pneg %p28
      $region22: #{a_call__.7} parent=19 // pred_check_branch
        %105 = sbr.rel (%p103) target = $region24
      $region23: #{a_call__.7} parent=19 // pred_region
        %p106 = scmp.lt.s32.totalorder %s8, 1
        %s107 = scalar_select %p106, %s8, 1
        %s108 = smul.addr %s107, 32
        %s109 = smul.addr %s108, 4
        %s110 = scalar_lea.vmem %s0, %s109
      $region24: #{a_call__.7} parent=19 // pred_fallthru
        _
    $region20: #{a_call__.7} parent=5 // pred_fallthru
      _
    %p111 = scmp.le.s32.totalorder 1, %s8
    %p112 = scmp.lt.s32.totalorder %s8, 3
    %p113 = pnand %p111, %p112
    %p114 = pneg %p113
    // Predicated region
    $region25: #{a_call__.7} parent=5 // pred_check
      _
    $region26: #{a_call__.7} parent=5 // pred_check_branch
      %116 = sbr.rel (%p113) target = $region28
    $region27: #{a_call__.7} parent=5 // pred_region
      %s117 = ssub.s32 %s8, 1
      %p118 = scmp.lt.s32.totalorder %s13, 1
      %s119 = scalar_select %p118, %s13, 1
      %s120 = smul.addr %s119, 32
      %s121 = smul.addr %s120, 4
      %s122 = scalar_lea.vmem %s0, %s121
      %p123 = pneg %p34
      %p124 = pneg %p31
      %p125 = pneg %p55
      %p126 = pneg %p52
      %p127 = pneg %p81
      %p128 = pneg %p78
      %p129 = scmp.lt.s32.totalorder %s13, 1
      %s130 = scalar_select %p129, %s13, 1
      %s131 = smul.addr %s130, 8
      %s132 = smul.addr %s131, 8
      %s133 = scalar_lea.vmem %s2, %s132
      %p134 = scmp.lt.s32.totalorder %s13, 1
      %s135 = scalar_select %p134, %s13, 1
      %s136 = smul.addr %s135, 32
      %s137 = smul.addr %s136, 4
      %s138 = scalar_lea.vmem %s0, %s137
      %p139 = scmp.lt.s32.totalorder %s13, 1
      %s140 = scalar_select %p139, %s13, 1
      %s141 = smul.addr %s140, 8
      %s142 = smul.addr %s141, 8
      %s143 = scalar_lea.vmem %s2, %s142
      %v145 = vld [vmem:[%s1] sm:$0xf]
      %v146 = vld [vmem:[%s138] sm:$0xff]
      %v147 = vld [vmem:[%s138 + $0x8] sm:$0xff]
      %v148 = vld [vmem:[%s138 + $0x10] sm:$0xff]
      %v149 = vld [vmem:[%s138 + $0x18] sm:$0xff]
      %v154 = vunpack.c.l.b16 %v146
      %v155 = vunpack.c.h.b16 %v146
      %v156 = vunpack.c.l.b16 %v147
      %v157 = vunpack.c.h.b16 %v147
      %v158 = vunpack.c.l.b16 %v148
      %v159 = vunpack.c.h.b16 %v148
      %v160 = vunpack.c.l.b16 %v149
      %v161 = vunpack.c.h.b16 %v149
      %v162 = vpack.c.b16 %v156, %v154
      %v163 = vpack.c.b16 %v157, %v155
      %v164 = vpack.c.b16 %v160, %v158
      %v165 = vpack.c.b16 %v161, %v159
      %vm170 = vcmask 261120
      %v172 = vsel %vm170, %v145, 0
      %174 = vmatpush.bf16.msra.mxu0 0
      %175 = vmatpush.bf16.msra.mxu0 0
      %176 = vmatpush.bf16.msra.mxu0 0
      %177 = vmatpush.bf16.msra.mxu0 0
      %178 = vmatpush.bf16.msra.mxu0 0
      %179 = vmatpush.bf16.msra.mxu0 0
      %180 = vmatpush.bf16.msra.mxu0 %v164
      %181 = vmatpush.bf16.msra.mxu0 %v162
      %182 = vmatmul.bf16.gmra.mxu0 %v172
      %v183 = vpop.f32.mrf.mxu0
      %v184 = vadd.f32 0.0, %v183
      %v185 = vpop.f32.mrf.mxu0
      %186 = vdwg.mxu0
      %187 = vmatpush.bf16.msra.mxu0 0
      %188 = vmatpush.bf16.msra.mxu0 0
      %189 = vmatpush.bf16.msra.mxu0 0
      %190 = vmatpush.bf16.msra.mxu0 0
      %191 = vmatpush.bf16.msra.mxu0 0
      %192 = vmatpush.bf16.msra.mxu0 0
      %193 = vmatpush.bf16.msra.mxu0 %v165
      %194 = vmatpush.bf16.msra.mxu0 %v163
      %195 = vmatmul.bf16.gmra.mxu0 %v172
      %v196 = vpop.f32.mrf.mxu0
      %v197 = vadd.f32 0.0, %v196
      %v198 = vpop.f32.mrf.mxu0
      %199 = vdwg.mxu0
      %s200 = scalar_lea.vmem %s1, 4
      %v201 = vld [vmem:[%s200] sm:$0xf]
      %s202 = scalar_lea.vmem %s138, 32
      %v203 = vld [vmem:[%s202] sm:$0xff]
      %v204 = vld [vmem:[%s202 + $0x8] sm:$0xff]
      %v205 = vld [vmem:[%s202 + $0x10] sm:$0xff]
      %v206 = vld [vmem:[%s202 + $0x18] sm:$0xff]
      %v211 = vunpack.c.l.b16 %v203
      %v212 = vunpack.c.h.b16 %v203
      %v213 = vunpack.c.l.b16 %v204
      %v214 = vunpack.c.h.b16 %v204
      %v215 = vunpack.c.l.b16 %v205
      %v216 = vunpack.c.h.b16 %v205
      %v217 = vunpack.c.l.b16 %v206
      %v218 = vunpack.c.h.b16 %v206
      %v219 = vpack.c.b16 %v213, %v211
      %v220 = vpack.c.b16 %v214, %v212
      %v221 = vpack.c.b16 %v217, %v215
      %v222 = vpack.c.b16 %v218, %v216
      %v228 = vsel %vm170, %v201, 0
      %230 = vmatpush.bf16.msra.mxu0 0
      %231 = vmatpush.bf16.msra.mxu0 0
      %232 = vmatpush.bf16.msra.mxu0 0
      %233 = vmatpush.bf16.msra.mxu0 0
      %234 = vmatpush.bf16.msra.mxu0 0
      %235 = vmatpush.bf16.msra.mxu0 0
      %236 = vmatpush.bf16.msra.mxu0 %v221
      %237 = vmatpush.bf16.msra.mxu0 %v219
      %238 = vmatmul.bf16.gmra.mxu0 %v228
      %v239 = vpop.f32.mrf.mxu0
      %v240 = vadd.f32 0.0, %v239
      %v241 = vpop.f32.mrf.mxu0
      %242 = vdwg.mxu0
      %243 = vmatpush.bf16.msra.mxu0 0
      %244 = vmatpush.bf16.msra.mxu0 0
      %245 = vmatpush.bf16.msra.mxu0 0
      %246 = vmatpush.bf16.msra.mxu0 0
      %247 = vmatpush.bf16.msra.mxu0 0
      %248 = vmatpush.bf16.msra.mxu0 0
      %249 = vmatpush.bf16.msra.mxu0 %v222
      %250 = vmatpush.bf16.msra.mxu0 %v220
      %251 = vmatmul.bf16.gmra.mxu0 %v228
      %v252 = vpop.f32.mrf.mxu0
      %v253 = vadd.f32 0.0, %v252
      %v254 = vpop.f32.mrf.mxu0
      %255 = vdwg.mxu0
      %s256 = scalar_lea.vmem %s1, 8
      %v257 = vld [vmem:[%s256] sm:$0xf]
      %s258 = scalar_lea.vmem %s138, 64
      %v259 = vld [vmem:[%s258] sm:$0xff]
      %v260 = vld [vmem:[%s258 + $0x8] sm:$0xff]
      %v261 = vld [vmem:[%s258 + $0x10] sm:$0xff]
      %v262 = vld [vmem:[%s258 + $0x18] sm:$0xff]
      %v267 = vunpack.c.l.b16 %v259
      %v268 = vunpack.c.h.b16 %v259
      %v269 = vunpack.c.l.b16 %v260
      %v270 = vunpack.c.h.b16 %v260
      %v271 = vunpack.c.l.b16 %v261
      %v272 = vunpack.c.h.b16 %v261
      %v273 = vunpack.c.l.b16 %v262
      %v274 = vunpack.c.h.b16 %v262
      %v275 = vpack.c.b16 %v269, %v267
      %v276 = vpack.c.b16 %v270, %v268
      %v277 = vpack.c.b16 %v273, %v271
      %v278 = vpack.c.b16 %v274, %v272
      %v284 = vsel %vm170, %v257, 0
      %286 = vmatpush.bf16.msra.mxu0 0
      %287 = vmatpush.bf16.msra.mxu0 0
      %288 = vmatpush.bf16.msra.mxu0 0
      %289 = vmatpush.bf16.msra.mxu0 0
      %290 = vmatpush.bf16.msra.mxu0 0
      %291 = vmatpush.bf16.msra.mxu0 0
      %292 = vmatpush.bf16.msra.mxu0 %v277
      %293 = vmatpush.bf16.msra.mxu0 %v275
      %294 = vmatmul.bf16.gmra.mxu0 %v284
      %v295 = vpop.f32.mrf.mxu0
      %v296 = vadd.f32 0.0, %v295
      %v297 = vpop.f32.mrf.mxu0
      %298 = vdwg.mxu0
      %299 = vmatpush.bf16.msra.mxu0 0
      %300 = vmatpush.bf16.msra.mxu0 0
      %301 = vmatpush.bf16.msra.mxu0 0
      %302 = vmatpush.bf16.msra.mxu0 0
      %303 = vmatpush.bf16.msra.mxu0 0
      %304 = vmatpush.bf16.msra.mxu0 0
      %305 = vmatpush.bf16.msra.mxu0 %v278
      %306 = vmatpush.bf16.msra.mxu0 %v276
      %307 = vmatmul.bf16.gmra.mxu0 %v284
      %v308 = vpop.f32.mrf.mxu0
      %v309 = vadd.f32 0.0, %v308
      %v310 = vpop.f32.mrf.mxu0
      %311 = vdwg.mxu0
      %s312 = scalar_lea.vmem %s1, 12
      %v313 = vld [vmem:[%s312] sm:$0xf]
      %s314 = scalar_lea.vmem %s138, 96
      %v315 = vld [vmem:[%s314] sm:$0xff]
      %v316 = vld [vmem:[%s314 + $0x8] sm:$0xff]
      %v317 = vld [vmem:[%s314 + $0x10] sm:$0xff]
      %v318 = vld [vmem:[%s314 + $0x18] sm:$0xff]
      %v323 = vunpack.c.l.b16 %v315
      %v324 = vunpack.c.h.b16 %v315
      %v325 = vunpack.c.l.b16 %v316
      %v326 = vunpack.c.h.b16 %v316
      %v327 = vunpack.c.l.b16 %v317
      %v328 = vunpack.c.h.b16 %v317
      %v329 = vunpack.c.l.b16 %v318
      %v330 = vunpack.c.h.b16 %v318
      %v331 = vpack.c.b16 %v325, %v323
      %v332 = vpack.c.b16 %v326, %v324
      %v333 = vpack.c.b16 %v329, %v327
      %v334 = vpack.c.b16 %v330, %v328
      %v340 = vsel %vm170, %v313, 0
      %342 = vmatpush.bf16.msra.mxu0 0
      %343 = vmatpush.bf16.msra.mxu0 0
      %344 = vmatpush.bf16.msra.mxu0 0
      %345 = vmatpush.bf16.msra.mxu0 0
      %346 = vmatpush.bf16.msra.mxu0 0
      %347 = vmatpush.bf16.msra.mxu0 0
      %348 = vmatpush.bf16.msra.mxu0 %v333
      %349 = vmatpush.bf16.msra.mxu0 %v331
      %350 = vmatmul.bf16.gmra.mxu0 %v340
      %v351 = vpop.f32.mrf.mxu0
      %v352 = vadd.f32 0.0, %v351
      %v353 = vpop.f32.mrf.mxu0
      %354 = vdwg.mxu0
      %355 = vmatpush.bf16.msra.mxu0 0
      %356 = vmatpush.bf16.msra.mxu0 0
      %357 = vmatpush.bf16.msra.mxu0 0
      %358 = vmatpush.bf16.msra.mxu0 0
      %359 = vmatpush.bf16.msra.mxu0 0
      %360 = vmatpush.bf16.msra.mxu0 0
      %361 = vmatpush.bf16.msra.mxu0 %v334
      %362 = vmatpush.bf16.msra.mxu0 %v332
      %363 = vmatmul.bf16.gmra.mxu0 %v340
      %v364 = vpop.f32.mrf.mxu0
      %v365 = vadd.f32 0.0, %v364
      %v366 = vpop.f32.mrf.mxu0
      %367 = vdwg.mxu0
      %368 = vst [vmem:[%s143] sm:$0xff] %v184
      %369 = vst [vmem:[%s143 + $0x8] sm:$0xff] %v197
      %s370 = scalar_lea.vmem %s143, 16
      %371 = vst [vmem:[%s370] sm:$0xff] %v240
      %372 = vst [vmem:[%s370 + $0x8] sm:$0xff] %v253
      %s373 = scalar_lea.vmem %s143, 32
      %374 = vst [vmem:[%s373] sm:$0xff] %v296
      %375 = vst [vmem:[%s373 + $0x8] sm:$0xff] %v309
      %s376 = scalar_lea.vmem %s143, 48
      %377 = vst [vmem:[%s376] sm:$0xff] %v352
      %378 = vst [vmem:[%s376 + $0x8] sm:$0xff] %v365
      %p379 = scmp.lt.s32.totalorder %s13, 1
      %s380 = scalar_select %p379, %s13, 1
      %s381 = smul.addr %s380, 8
      %s382 = smul.addr %s381, 8
      %s383 = scalar_lea.vmem %s2, %s382
      // Predicated region
      $region29: #{a_call__.7} parent=27 // pred_check
        %p384 = pneg %p78
      $region30: #{a_call__.7} parent=27 // pred_check_branch
        %386 = sbr.rel (%p384) target = $region32
      $region31: #{a_call__.7} parent=27 // pred_region
        _
      $region32: #{a_call__.7} parent=27 // pred_fallthru
        _
    $region28: #{a_call__.7} parent=5 // pred_fallthru
      _
    %p387 = scmp.le.s32.totalorder 2, %s8
    // Predicated region
    $region33: #{a_call__.7} parent=5 // pred_check
      %p388 = pneg %p387
    $region34: #{a_call__.7} parent=5 // pred_check_branch
      %390 = sbr.rel (%p388) target = $region36
    $region35: #{a_call__.7} parent=5 // pred_region
      %s391 = ssub.s32 %s8, 2
      // Predicated region
      $region37: #{a_call__.7} parent=35 // pred_check
        %p392 = pneg %p84
      $region38: #{a_call__.7} parent=35 // pred_check_branch
        %394 = sbr.rel (%p392) target = $region40
      $region39: #{a_call__.7} parent=35 // pred_region
        %p395 = scmp.lt.s32.totalorder %s14, 1
        %s396 = scalar_select %p395, %s14, 1
        %s397 = smul.addr %s396, 8
        %s398 = smul.addr %s397, 8
        %s399 = scalar_lea.vmem %s2, %s398
      $region40: #{a_call__.7} parent=35 // pred_fallthru
        _
    $region36: #{a_call__.7} parent=5 // pred_fallthru
      _
  $region6: #{a_call__.7} parent=0 // loop_footer
    %s12 = sadd.s32 1, %s8
  $region7: #{a_call__.7} parent=0 // loop_footer_branch
    %7 = sbr.rel target = $region3
  $region8: #{a_call__.7} parent=0 // loop_exit
    _

</llo_original>
